<compile_context>
chip_gen: v6e
topology: v6e:2x2x1
jax: 0.10.0
libtpu: 0.0.40
codegen_flags: <defaults>
</compile_context>

<pallas_src>
import functools
import numpy as np
import jax
import jax.numpy as jnp
from jax.experimental import pallas as pl
from jax.experimental.pallas import tpu as pltpu

PAD = 0
NEG_INF = -1e30   # additive mask bias; exp underflows to exactly 0 in f32


# ----------------------------- glue: tables -----------------------------

def get_sinusoid_encoding_table(n_position, d_hid, padding_idx=None):
    position = np.arange(n_position)[:, None].astype(np.float64)
    hid = np.arange(d_hid)[None, :]
    angle = position / np.power(10000.0, 2.0 * (hid // 2) / d_hid)
    table = np.zeros((n_position, d_hid), dtype=np.float32)
    table[:, 0::2] = np.sin(angle[:, 0::2])
    table[:, 1::2] = np.cos(angle[:, 1::2])
    if padding_idx is not None:
        table[padding_idx] = 0.0
    return jnp.asarray(table, dtype=jnp.float32)


# ----------------------------- Pallas kernel -----------------------------

def _layer_norm(x, gamma, beta, eps=1e-5):
    mu = jnp.mean(x, axis=-1, keepdims=True)
    var = jnp.mean(jnp.square(x - mu), axis=-1, keepdims=True)
    return (x - mu) * jax.lax.rsqrt(var + eps) * gamma + beta


def _encoder_stack_kernel(n_head, d_k, d_v,
                          x_ref, bias_ref, npad_ref,
                          wqkv_ref, bqkv_ref, wo_ref, bo_ref, lnp_ref,
                          w1_ref, b1_ref, w2_ref, b2_ref,
                          enc_ref, attn_ref,
                          res_ref, ctx_ref):
    layer = pl.program_id(1)
    bb, L, D = x_ref.shape
    H = n_head

    # Layer 0: load the embedding sum into the resident residual stream.
    @pl.when(layer == 0)
    def _():
        res_ref[...] = x_ref[...]

    x = res_ref[...]                          # (bb, L, D) f32 residual stream
    npad = npad_ref[...]                      # (bb, L, 1) f32 non-pad mask
    bias = bias_ref[...].astype(jnp.float32)  # (bb, L, L) additive attn bias

    # ---- multi-head self-attention --------------------------------------
    x2 = x.reshape(bb * L, D).astype(jnp.bfloat16)
    # Fused QKV projection: one MXU pass, f32 accumulation.
    qkv = jnp.dot(x2, wqkv_ref[...],
                  preferred_element_type=jnp.float32) + bqkv_ref[...]
    nq = H * d_k
    inv_temp = jnp.float32(1.0 / float(np.sqrt(d_k)))
    q = (qkv[:, :nq] * inv_temp).astype(jnp.bfloat16)   # pre-scaled by 1/sqrt(dk)
    k = qkv[:, nq:2 * nq].astype(jnp.bfloat16)
    v = qkv[:, 2 * nq:2 * nq + H * d_v].astype(jnp.bfloat16)

    for h in range(H):   # static unroll; n_head is small
        q_h = q[:, h * d_k:(h + 1) * d_k].reshape(bb, L, d_k)
        k_h = k[:, h * d_k:(h + 1) * d_k].reshape(bb, L, d_k)
        v_h = v[:, h * d_v:(h + 1) * d_v].reshape(bb, L, d_v)
        s = jnp.einsum('bqd,bkd->bqk', q_h, k_h,
                       preferred_element_type=jnp.float32) + bias
        m = jnp.max(s, axis=-1, keepdims=True)
        e = jnp.exp(s - m)
        p = e * pl.reciprocal(jnp.sum(e, axis=-1, keepdims=True), approx=True)
        # Zero attention rows of pad query positions (reference produces
        # NaN/garbage there; outputs are masked downstream anyway).
        p = p * npad
        attn_ref[h] = p
        ctx_h = jnp.einsum('bqk,bkd->bqd', p.astype(jnp.bfloat16), v_h,
                           preferred_element_type=jnp.float32)
        # Write head output into the shared scratch (no concatenate).
        ctx_ref[:, h * d_v:(h + 1) * d_v] = ctx_h.reshape(bb * L, d_v)

    mha = jnp.dot(ctx_ref[...].astype(jnp.bfloat16), wo_ref[...],
                  preferred_element_type=jnp.float32) + bo_ref[...]
    lnp = lnp_ref[...]                        # (4, D): [g1, b1, g2, b2]
    y = _layer_norm(mha.reshape(bb, L, D) + x, lnp[0:1], lnp[1:2])
    y = y * npad

    # ---- position-wise FFN (Conv1d k=1 == per-position linear) ----------
    h1 = jnp.maximum(
        jnp.dot(y.reshape(bb * L, D).astype(jnp.bfloat16), w1_ref[...],
                preferred_element_type=jnp.float32) + b1_ref[...], 0.0)
    h2 = jnp.dot(h1.astype(jnp.bfloat16), w2_ref[...],
                 preferred_element_type=jnp.float32) + b2_ref[...]
    z = _layer_norm(h2.reshape(bb, L, D) + y, lnp[2:3], lnp[3:4])
    out = z * npad

    res_ref[...] = out      # stays resident in VMEM for the next layer
    enc_ref[...] = out      # flushed to HBM once per batch tile


def _pick_batch_block(B, L, target_rows=512):
    """Largest batch-block that divides B, keeps the tile <= target_rows rows,
    and keeps the attention-output block legal (bb == B or bb % 8 == 0)."""
    bb = B
    for cand in range(1, B + 1):
        if B % cand:
            continue
        if cand != B and cand % 8:
            continue
        if cand * L <= target_rows:
            bb = cand
    return bb


def encoder_stack(x, attn_bias, non_pad, wts, n_head, d_k, d_v):
    B, L, D = x.shape
    n_layer = wts['wqkv'].shape[0]
    bb = _pick_batch_block(B, L)
    grid = (B // bb, n_layer)          # layer axis innermost (sequential carry)

    def act_spec(*tail):
        nzeros = len(tail)
        return pl.BlockSpec((bb,) + tail, lambda bt, l: (bt,) + (0,) * nzeros)

    def weight_spec(w):
        # One layer's weights per step; the pipeline double-buffers these so the
        # next layer's weights are prefetched during the current layer.
        return pl.BlockSpec((pl.Squeezed(),) + w.shape[1:],
                            lambda bt, l: (l, 0, 0))

    weight_args = [wts['wqkv'], wts['bqkv'], wts['wo'], wts['bo'], wts['lnp'],
                   wts['w1'], wts['b1'], wts['w2'], wts['b2']]

    in_specs = ([act_spec(L, D), act_spec(L, L), act_spec(L, 1)]
                + [weight_spec(w) for w in weight_args])

    out_specs = (
        pl.BlockSpec((bb, L, D), lambda bt, l: (bt, 0, 0)),
        pl.BlockSpec((n_head, bb, L, L), lambda bt, l: (l, bt, 0, 0)),
    )
    out_shape = (
        jax.ShapeDtypeStruct((B, L, D), jnp.float32),
        jax.ShapeDtypeStruct((n_layer * n_head, B, L, L), jnp.float32),
    )

    kernel = functools.partial(_encoder_stack_kernel, n_head, d_k, d_v)
    enc, attn = pl.pallas_call(
        kernel,
        out_shape=out_shape,
        grid=grid,
        in_specs=in_specs,
        out_specs=out_specs,
        scratch_shapes=[
            pltpu.VMEM((bb, L, D), jnp.float32),               # residual stream
            pltpu.VMEM((bb * L, n_head * d_v), jnp.float32),   # head outputs
        ],
        compiler_params=pltpu.CompilerParams(
            # Batch tiles can be sharded over both TensorCores on v7x; the
            # layer axis is a sequential carry.  Raise vmem_limit_bytes here
            # when tiles are enlarged for production shapes.
            dimension_semantics=("parallel", "arbitrary")),
    )(x, attn_bias, non_pad, *weight_args)
    return enc, attn.reshape(n_layer, n_head, B, L, L)


# ----------------------------- parameters -----------------------------

def init_params(key, n_src_vocab, n_lvl_vocab, max_seq_len, n_layer, n_head,
                d_k, d_v, d_model, d_inner):
    k_tok, k_lvl, k_layers = jax.random.split(key, 3)
    token_emb = 0.1 * jax.random.normal(k_tok, (n_src_vocab, d_model), jnp.float32)
    token_emb = token_emb.at[PAD].set(0.0)
    lvl_emb = 0.1 * jax.random.normal(k_lvl, (n_lvl_vocab, d_model), jnp.float32)
    lvl_emb = lvl_emb.at[PAD].set(0.0)
    pos_table = get_sinusoid_encoding_table(max_seq_len + 1, d_model, padding_idx=PAD)

    def nrm(k, shape, fan_sum):
        return ((2.0 / fan_sum) ** 0.5) * jax.random.normal(k, shape, jnp.float32)

    lkeys = jax.random.split(k_layers, n_layer * 6)
    wq, wk, wv, wo, w1, w2 = [], [], [], [], [], []
    for li in range(n_layer):
        ks = [lkeys[li * 6 + j] for j in range(6)]
        wq.append(nrm(ks[0], (d_model, n_head * d_k), d_model + d_k))
        wk.append(nrm(ks[1], (d_model, n_head * d_k), d_model + d_k))
        wv.append(nrm(ks[2], (d_model, n_head * d_v), d_model + d_v))
        wo.append(nrm(ks[3], (n_head * d_v, d_model), n_head * d_v + d_model))
        w1.append(nrm(ks[4], (d_model, d_inner), d_model + d_inner))
        w2.append(nrm(ks[5], (d_inner, d_model), d_inner + d_model))

    n_qkv = n_head * (2 * d_k + d_v)
    ln_base = jnp.stack([jnp.ones((d_model,), jnp.float32),
                         jnp.zeros((d_model,), jnp.float32),
                         jnp.ones((d_model,), jnp.float32),
                         jnp.zeros((d_model,), jnp.float32)], axis=0)
    layers = dict(
        # MXU inputs stored in bf16 (halves weight DMA); biases / LN params f32.
        wqkv=jnp.concatenate([jnp.stack(wq), jnp.stack(wk), jnp.stack(wv)],
                             axis=-1).astype(jnp.bfloat16),
        bqkv=jnp.zeros((n_layer, 1, n_qkv), jnp.float32),
        wo=jnp.stack(wo).astype(jnp.bfloat16),
        bo=jnp.zeros((n_layer, 1, d_model), jnp.float32),
        lnp=jnp.tile(ln_base[None], (n_layer, 1, 1)),
        w1=jnp.stack(w1).astype(jnp.bfloat16),
        b1=jnp.zeros((n_layer, 1, d_inner), jnp.float32),
        w2=jnp.stack(w2).astype(jnp.bfloat16),
        b2=jnp.zeros((n_layer, 1, d_model), jnp.float32),
    )
    return dict(token_emb=token_emb, lvl_emb=lvl_emb, pos_table=pos_table,
                layers=layers)


# ----------------------------- forward -----------------------------

def syn_trf_encoder_forward(params, syn_seq, lvl_seq, pos_seq, path_mask,
                            n_head, d_k, d_v):
    B, L = syn_seq.shape
    # get_attn_key_pad_mask: True where the attention KEY is a PAD token.
    slf_attn_mask = jnp.broadcast_to((syn_seq == PAD)[:, None, :], (B, L, L))
    # TODO(synk): SynTrfEncoderLayer source not provided; path_mask is applied as
    # an additional boolean attention mask OR-ed with the key-padding mask.
    mask_bool = jnp.logical_or(slf_attn_mask, path_mask)
    attn_bias = jnp.where(mask_bool, NEG_INF, 0.0).astype(jnp.bfloat16)
    non_pad = (syn_seq != PAD).astype(jnp.float32)[:, :, None]

    # Embedding sums (gathers) stay in plain-JAX glue.
    enc0 = (params['token_emb'][syn_seq]
            + params['lvl_emb'][lvl_seq]
            + params['pos_table'][pos_seq])

    enc, attn = encoder_stack(enc0, attn_bias, non_pad, params['layers'],
                              n_head, d_k, d_v)
    # attn: (n_layer, n_head, B, L, L) -> per-layer (B, n_head, L, L)
    enc_attn_list = [jnp.transpose(attn[i], (1, 0, 2, 3))
                     for i in range(attn.shape[0])]
    return enc, enc_attn_list


# ----------------------------- main -----------------------------

if __name__ == "__main__":
    B, L = 2, 8
    d_model, d_inner = 32, 64
    n_layer, n_head, d_k, d_v = 2, 2, 16, 16
    max_seq_len = L
    n_src_vocab, n_lvl_vocab = 20, 10

    key = jax.random.PRNGKey(0)
    kp, k1, k2, k3 = jax.random.split(key, 4)
    params = init_params(kp, n_src_vocab, n_lvl_vocab, max_seq_len,
                         n_layer, n_head, d_k, d_v, d_model, d_inner)

    lengths = jnp.array([8, 6])
    pos = jnp.arange(1, L + 1)[None, :]
    valid = pos <= lengths[:, None]
    syn_seq = jnp.where(valid, jax.random.randint(k1, (B, L), 1, n_src_vocab), PAD).astype(jnp.int32)
    lvl_seq = jnp.where(valid, jax.random.randint(k2, (B, L), 1, n_lvl_vocab), PAD).astype(jnp.int32)
    pos_seq = jnp.where(valid, pos, PAD).astype(jnp.int32)
    path_mask = jax.random.uniform(k3, (B, L, L)) < 0.1   # boolean structural mask

    fwd = jax.jit(functools.partial(syn_trf_encoder_forward,
                                    n_head=n_head, d_k=d_k, d_v=d_v))
    enc_out, attn_list = fwd(params, syn_seq, lvl_seq, pos_seq, path_mask)

    jax.block_until_ready(enc_out)
    for a in attn_list:
        jax.block_until_ready(a)

    assert enc_out.shape == (B, L, d_model)
    assert all(a.shape == (B, n_head, L, L) for a in attn_list)
    assert bool(jnp.all(jnp.isfinite(enc_out)))
    print("KERNEL_OK")
</pallas_src>

<mosaic_0001>
module attributes {stable_mosaic.version = 11 : i64} {
  func.func @_encoder_stack_kernel(%arg0: i32, %arg1: i32, %arg2: memref<2x8x32xf32, #tpu.memory_space<vmem>>, %arg3: memref<2x8x8xbf16, #tpu.memory_space<vmem>>, %arg4: memref<2x8x1xf32, #tpu.memory_space<vmem>>, %arg5: memref<1x32x96xbf16, #tpu.memory_space<vmem>>, %arg6: memref<1x1x96xf32, #tpu.memory_space<vmem>>, %arg7: memref<1x32x32xbf16, #tpu.memory_space<vmem>>, %arg8: memref<1x1x32xf32, #tpu.memory_space<vmem>>, %arg9: memref<1x4x32xf32, #tpu.memory_space<vmem>>, %arg10: memref<1x32x64xbf16, #tpu.memory_space<vmem>>, %arg11: memref<1x1x64xf32, #tpu.memory_space<vmem>>, %arg12: memref<1x64x32xbf16, #tpu.memory_space<vmem>>, %arg13: memref<1x1x32xf32, #tpu.memory_space<vmem>>, %arg14: memref<2x8x32xf32, #tpu.memory_space<vmem>>, %arg15: memref<2x2x8x8xf32, #tpu.memory_space<vmem>>, %arg16: memref<2x8x32xf32, #tpu.memory_space<vmem>>, %arg17: memref<16x32xf32, #tpu.memory_space<vmem>>) attributes {dimension_semantics = [#tpu.dimension_semantics<parallel>, #tpu.dimension_semantics<arbitrary>], iteration_bounds = array<i64: 1, 2>, scalar_prefetch = 0 : i64, scratch_operands = 2 : i64, tpu.core_type = #tpu.core_type<tc>, window_params = [{transform_indices = @transform_0, window_bounds = array<i64: 2, 8, 32>}, {transform_indices = @transform_1, window_bounds = array<i64: 2, 8, 8>}, {transform_indices = @transform_2, window_bounds = array<i64: 2, 8, 1>}, {transform_indices = @transform_3, window_bounds = array<i64: 1, 32, 96>}, {transform_indices = @transform_4, window_bounds = array<i64: 1, 1, 96>}, {transform_indices = @transform_5, window_bounds = array<i64: 1, 32, 32>}, {transform_indices = @transform_6, window_bounds = array<i64: 1, 1, 32>}, {transform_indices = @transform_7, window_bounds = array<i64: 1, 4, 32>}, {transform_indices = @transform_8, window_bounds = array<i64: 1, 32, 64>}, {transform_indices = @transform_9, window_bounds = array<i64: 1, 1, 64>}, {transform_indices = @transform_10, window_bounds = array<i64: 1, 64, 32>}, {transform_indices = @transform_11, window_bounds = array<i64: 1, 1, 32>}, {transform_indices = @transform_12, window_bounds = array<i64: 2, 8, 32>}, {transform_indices = @transform_13, window_bounds = array<i64: 2, 2, 8, 8>}]} {
    %c0_i32 = arith.constant 0 : i32
    %0 = arith.cmpi eq, %arg1, %c0_i32 : i32
    %1 = arith.extui %0 : i1 to i32
    %c0_i32_0 = arith.constant 0 : i32
    %2 = arith.cmpi ne, %1, %c0_i32_0 : i32
    scf.if %2 {
      %c0_77 = arith.constant 0 : index
      %c0_78 = arith.constant 0 : index
      %c0_79 = arith.constant 0 : index
      %170 = vector.load %arg2[%c0_77, %c0_78, %c0_79] : memref<2x8x32xf32, #tpu.memory_space<vmem>>, vector<2x8x32xf32>
      %c0_80 = arith.constant 0 : index
      %c0_81 = arith.constant 0 : index
      %c0_82 = arith.constant 0 : index
      %171 = vector.load %arg16[%c0_80, %c0_81, %c0_82] : memref<2x8x32xf32, #tpu.memory_space<vmem>>, vector<2x8x32xf32>
      tpu.vector_store %arg16[%c0_80, %c0_81, %c0_82], %170 {strides = array<i32>} : memref<2x8x32xf32, #tpu.memory_space<vmem>>, vector<2x8x32xf32>,
    } else {
    }
    %c0 = arith.constant 0 : index
    %c0_1 = arith.constant 0 : index
    %c0_2 = arith.constant 0 : index
    %3 = vector.load %arg16[%c0, %c0_1, %c0_2] : memref<2x8x32xf32, #tpu.memory_space<vmem>>, vector<2x8x32xf32>
    %c0_3 = arith.constant 0 : index
    %c0_4 = arith.constant 0 : index
    %c0_5 = arith.constant 0 : index
    %4 = vector.load %arg4[%c0_3, %c0_4, %c0_5] : memref<2x8x1xf32, #tpu.memory_space<vmem>>, vector<2x8x1xf32>
    %c0_6 = arith.constant 0 : index
    %c0_7 = arith.constant 0 : index
    %c0_8 = arith.constant 0 : index
    %5 = vector.load %arg3[%c0_6, %c0_7, %c0_8] : memref<2x8x8xbf16, #tpu.memory_space<vmem>>, vector<2x8x8xbf16>
    %6 = arith.extf %5 : vector<2x8x8xbf16> to vector<2x8x8xf32>
    %7 = vector.shape_cast %3 : vector<2x8x32xf32> to vector<16x32xf32>
    %8 = arith.truncf %7 : vector<16x32xf32> to vector<16x32xbf16>
    %c0_9 = arith.constant 0 : index
    %c0_10 = arith.constant 0 : index
    %c0_11 = arith.constant 0 : index
    %9 = vector.load %arg5[%c0_9, %c0_10, %c0_11] : memref<1x32x96xbf16, #tpu.memory_space<vmem>>, vector<1x32x96xbf16>
    %10 = vector.shape_cast %9 : vector<1x32x96xbf16> to vector<32x96xbf16>
    %cst = arith.constant dense<0.000000e+00> : vector<16x96xf32>
    %11 = tpu.matmul %8, %10, %cst {dimension_numbers = #tpu.dot_dimension_numbers<[1], [0], [0], [1], [0, 0, 1, 1], [], []>} : vector<16x32xbf16>, vector<32x96xbf16>, vector<16x96xf32> -> vector<16x96xf32>
    %c0_12 = arith.constant 0 : index
    %c0_13 = arith.constant 0 : index
    %c0_14 = arith.constant 0 : index
    %12 = vector.load %arg6[%c0_12, %c0_13, %c0_14] : memref<1x1x96xf32, #tpu.memory_space<vmem>>, vector<1x1x96xf32>
    %13 = vector.shape_cast %12 : vector<1x1x96xf32> to vector<1x96xf32>
    %14 = vector.broadcast %13 : vector<1x96xf32> to vector<16x96xf32>
    %15 = arith.addf %11, %14 : vector<16x96xf32>
    %16 = vector.extract_strided_slice %15 {offsets = [0, 0], sizes = [16, 32], strides = [1, 1]} : vector<16x96xf32> to vector<16x32xf32>
    %cst_15 = arith.constant 2.500000e-01 : f32
    %17 = vector.broadcast %cst_15 : f32 to vector<16x32xf32>
    %18 = arith.mulf %16, %17 : vector<16x32xf32>
    %19 = arith.truncf %18 : vector<16x32xf32> to vector<16x32xbf16>
    %20 = vector.extract_strided_slice %15 {offsets = [0, 32], sizes = [16, 32], strides = [1, 1]} : vector<16x96xf32> to vector<16x32xf32>
    %21 = arith.truncf %20 : vector<16x32xf32> to vector<16x32xbf16>
    %22 = vector.extract_strided_slice %15 {offsets = [0, 64], sizes = [16, 32], strides = [1, 1]} : vector<16x96xf32> to vector<16x32xf32>
    %23 = arith.truncf %22 : vector<16x32xf32> to vector<16x32xbf16>
    %24 = vector.extract_strided_slice %19 {offsets = [0, 0], sizes = [16, 16], strides = [1, 1]} : vector<16x32xbf16> to vector<16x16xbf16>
    %25 = vector.shape_cast %24 : vector<16x16xbf16> to vector<2x8x16xbf16>
    %26 = vector.extract_strided_slice %21 {offsets = [0, 0], sizes = [16, 16], strides = [1, 1]} : vector<16x32xbf16> to vector<16x16xbf16>
    %27 = vector.shape_cast %26 : vector<16x16xbf16> to vector<2x8x16xbf16>
    %28 = vector.extract_strided_slice %23 {offsets = [0, 0], sizes = [16, 16], strides = [1, 1]} : vector<16x32xbf16> to vector<16x16xbf16>
    %29 = vector.shape_cast %28 : vector<16x16xbf16> to vector<2x8x16xbf16>
    "tpu.trace_start"() <{level = 10 : i32, message = "bqd,bkd->bqk"}> : () -> ()
    %cst_16 = arith.constant dense<0.000000e+00> : vector<2x8x8xf32>
    %30 = tpu.matmul %25, %27, %cst_16 {dimension_numbers = #tpu.dot_dimension_numbers<[2], [2], [1], [1], [0, 0, 0, 1, 1, 1], [0], [0]>} : vector<2x8x16xbf16>, vector<2x8x16xbf16>, vector<2x8x8xf32> -> vector<2x8x8xf32>
    "tpu.trace_stop"() : () -> ()
    %31 = arith.addf %30, %6 : vector<2x8x8xf32>
    %cst_17 = arith.constant dense<0xFF800000> : vector<2x8xf32>
    %32 = vector.multi_reduction <maximumf>, %31, %cst_17 [2] : vector<2x8x8xf32> to vector<2x8xf32>
    %33 = vector.shape_cast %32 : vector<2x8xf32> to vector<2x8x1xf32>
    %34 = vector.broadcast %33 : vector<2x8x1xf32> to vector<2x8x8xf32>
    %35 = arith.subf %31, %34 : vector<2x8x8xf32>
    %36 = math.exp %35 : vector<2x8x8xf32>
    %cst_18 = arith.constant dense<0.000000e+00> : vector<2x8xf32>
    %37 = vector.multi_reduction <add>, %36, %cst_18 [2] : vector<2x8x8xf32> to vector<2x8xf32>
    %38 = vector.shape_cast %37 : vector<2x8xf32> to vector<2x8x1xf32>
    %39 = tpu.reciprocal %38 {approx = true} : vector<2x8x1xf32> -> vector<2x8x1xf32>
    %40 = vector.broadcast %39 : vector<2x8x1xf32> to vector<2x8x8xf32>
    %41 = arith.mulf %36, %40 : vector<2x8x8xf32>
    %42 = vector.broadcast %4 : vector<2x8x1xf32> to vector<2x8x8xf32>
    %43 = arith.mulf %41, %42 : vector<2x8x8xf32>
    %c0_19 = arith.constant 0 : index
    %c0_20 = arith.constant 0 : index
    %c0_21 = arith.constant 0 : index
    %c0_22 = arith.constant 0 : index
    %44 = vector.load %arg15[%c0_19, %c0_20, %c0_21, %c0_22] : memref<2x2x8x8xf32, #tpu.memory_space<vmem>>, vector<1x2x8x8xf32>
    %45 = vector.shape_cast %44 : vector<1x2x8x8xf32> to vector<2x8x8xf32>
    %46 = vector.shape_cast %43 : vector<2x8x8xf32> to vector<1x2x8x8xf32>
    tpu.vector_store %arg15[%c0_19, %c0_20, %c0_21, %c0_22], %46 {strides = array<i32>} : memref<2x2x8x8xf32, #tpu.memory_space<vmem>>, vector<1x2x8x8xf32>,
    %47 = arith.truncf %43 : vector<2x8x8xf32> to vector<2x8x8xbf16>
    "tpu.trace_start"() <{level = 10 : i32, message = "bqk,bkd->bqd"}> : () -> ()
    %cst_23 = arith.constant dense<0.000000e+00> : vector<2x8x16xf32>
    %48 = tpu.matmul %47, %29, %cst_23 {dimension_numbers = #tpu.dot_dimension_numbers<[2], [1], [1], [2], [0, 0, 0, 1, 1, 2], [0], [0]>} : vector<2x8x8xbf16>, vector<2x8x16xbf16>, vector<2x8x16xf32> -> vector<2x8x16xf32>
    "tpu.trace_stop"() : () -> ()
    %49 = vector.shape_cast %48 : vector<2x8x16xf32> to vector<16x16xf32>
    %c0_24 = arith.constant 0 : index
    %c0_25 = arith.constant 0 : index
    %50 = vector.load %arg17[%c0_24, %c0_25] : memref<16x32xf32, #tpu.memory_space<vmem>>, vector<16x16xf32>
    tpu.vector_store %arg17[%c0_24, %c0_25], %49 {strides = array<i32>} : memref<16x32xf32, #tpu.memory_space<vmem>>, vector<16x16xf32>,
    %51 = vector.extract_strided_slice %19 {offsets = [0, 16], sizes = [16, 16], strides = [1, 1]} : vector<16x32xbf16> to vector<16x16xbf16>
    %52 = vector.shape_cast %51 : vector<16x16xbf16> to vector<2x8x16xbf16>
    %53 = vector.extract_strided_slice %21 {offsets = [0, 16], sizes = [16, 16], strides = [1, 1]} : vector<16x32xbf16> to vector<16x16xbf16>
    %54 = vector.shape_cast %53 : vector<16x16xbf16> to vector<2x8x16xbf16>
    %55 = vector.extract_strided_slice %23 {offsets = [0, 16], sizes = [16, 16], strides = [1, 1]} : vector<16x32xbf16> to vector<16x16xbf16>
    %56 = vector.shape_cast %55 : vector<16x16xbf16> to vector<2x8x16xbf16>
    "tpu.trace_start"() <{level = 10 : i32, message = "bqd,bkd->bqk"}> : () -> ()
    %cst_26 = arith.constant dense<0.000000e+00> : vector<2x8x8xf32>
    %57 = tpu.matmul %52, %54, %cst_26 {dimension_numbers = #tpu.dot_dimension_numbers<[2], [2], [1], [1], [0, 0, 0, 1, 1, 1], [0], [0]>} : vector<2x8x16xbf16>, vector<2x8x16xbf16>, vector<2x8x8xf32> -> vector<2x8x8xf32>
    "tpu.trace_stop"() : () -> ()
    %58 = arith.addf %57, %6 : vector<2x8x8xf32>
    %cst_27 = arith.constant dense<0xFF800000> : vector<2x8xf32>
    %59 = vector.multi_reduction <maximumf>, %58, %cst_27 [2] : vector<2x8x8xf32> to vector<2x8xf32>
    %60 = vector.shape_cast %59 : vector<2x8xf32> to vector<2x8x1xf32>
    %61 = vector.broadcast %60 : vector<2x8x1xf32> to vector<2x8x8xf32>
    %62 = arith.subf %58, %61 : vector<2x8x8xf32>
    %63 = math.exp %62 : vector<2x8x8xf32>
    %cst_28 = arith.constant dense<0.000000e+00> : vector<2x8xf32>
    %64 = vector.multi_reduction <add>, %63, %cst_28 [2] : vector<2x8x8xf32> to vector<2x8xf32>
    %65 = vector.shape_cast %64 : vector<2x8xf32> to vector<2x8x1xf32>
    %66 = tpu.reciprocal %65 {approx = true} : vector<2x8x1xf32> -> vector<2x8x1xf32>
    %67 = vector.broadcast %66 : vector<2x8x1xf32> to vector<2x8x8xf32>
    %68 = arith.mulf %63, %67 : vector<2x8x8xf32>
    %69 = vector.broadcast %4 : vector<2x8x1xf32> to vector<2x8x8xf32>
    %70 = arith.mulf %68, %69 : vector<2x8x8xf32>
    %c1 = arith.constant 1 : index
    %c0_29 = arith.constant 0 : index
    %c0_30 = arith.constant 0 : index
    %c0_31 = arith.constant 0 : index
    %71 = vector.load %arg15[%c1, %c0_29, %c0_30, %c0_31] : memref<2x2x8x8xf32, #tpu.memory_space<vmem>>, vector<1x2x8x8xf32>
    %72 = vector.shape_cast %71 : vector<1x2x8x8xf32> to vector<2x8x8xf32>
    %73 = vector.shape_cast %70 : vector<2x8x8xf32> to vector<1x2x8x8xf32>
    tpu.vector_store %arg15[%c1, %c0_29, %c0_30, %c0_31], %73 {strides = array<i32>} : memref<2x2x8x8xf32, #tpu.memory_space<vmem>>, vector<1x2x8x8xf32>,
    %74 = arith.truncf %70 : vector<2x8x8xf32> to vector<2x8x8xbf16>
    "tpu.trace_start"() <{level = 10 : i32, message = "bqk,bkd->bqd"}> : () -> ()
    %cst_32 = arith.constant dense<0.000000e+00> : vector<2x8x16xf32>
    %75 = tpu.matmul %74, %56, %cst_32 {dimension_numbers = #tpu.dot_dimension_numbers<[2], [1], [1], [2], [0, 0, 0, 1, 1, 2], [0], [0]>} : vector<2x8x8xbf16>, vector<2x8x16xbf16>, vector<2x8x16xf32> -> vector<2x8x16xf32>
    "tpu.trace_stop"() : () -> ()
    %76 = vector.shape_cast %75 : vector<2x8x16xf32> to vector<16x16xf32>
    %c0_33 = arith.constant 0 : index
    %c16 = arith.constant 16 : index
    %77 = vector.load %arg17[%c0_33, %c16] : memref<16x32xf32, #tpu.memory_space<vmem>>, vector<16x16xf32>
    tpu.vector_store %arg17[%c0_33, %c16], %76 {strides = array<i32>} : memref<16x32xf32, #tpu.memory_space<vmem>>, vector<16x16xf32>,
    %c0_34 = arith.constant 0 : index
    %c0_35 = arith.constant 0 : index
    %78 = vector.load %arg17[%c0_34, %c0_35] : memref<16x32xf32, #tpu.memory_space<vmem>>, vector<16x32xf32>
    %79 = arith.truncf %78 : vector<16x32xf32> to vector<16x32xbf16>
    %c0_36 = arith.constant 0 : index
    %c0_37 = arith.constant 0 : index
    %c0_38 = arith.constant 0 : index
    %80 = vector.load %arg7[%c0_36, %c0_37, %c0_38] : memref<1x32x32xbf16, #tpu.memory_space<vmem>>, vector<1x32x32xbf16>
    %81 = vector.shape_cast %80 : vector<1x32x32xbf16> to vector<32x32xbf16>
    %cst_39 = arith.constant dense<0.000000e+00> : vector<16x32xf32>
    %82 = tpu.matmul %79, %81, %cst_39 {dimension_numbers = #tpu.dot_dimension_numbers<[1], [0], [0], [1], [0, 0, 1, 1], [], []>} : vector<16x32xbf16>, vector<32x32xbf16>, vector<16x32xf32> -> vector<16x32xf32>
    %c0_40 = arith.constant 0 : index
    %c0_41 = arith.constant 0 : index
    %c0_42 = arith.constant 0 : index
    %83 = vector.load %arg8[%c0_40, %c0_41, %c0_42] : memref<1x1x32xf32, #tpu.memory_space<vmem>>, vector<1x1x32xf32>
    %84 = vector.shape_cast %83 : vector<1x1x32xf32> to vector<1x32xf32>
    %85 = vector.broadcast %84 : vector<1x32xf32> to vector<16x32xf32>
    %86 = arith.addf %82, %85 : vector<16x32xf32>
    %c0_43 = arith.constant 0 : index
    %c0_44 = arith.constant 0 : index
    %c0_45 = arith.constant 0 : index
    %87 = vector.load %arg9[%c0_43, %c0_44, %c0_45] : memref<1x4x32xf32, #tpu.memory_space<vmem>>, vector<1x4x32xf32>
    %88 = vector.shape_cast %87 : vector<1x4x32xf32> to vector<4x32xf32>
    %89 = vector.shape_cast %86 : vector<16x32xf32> to vector<2x8x32xf32>
    %90 = arith.addf %89, %3 : vector<2x8x32xf32>
    %91 = vector.extract_strided_slice %88 {offsets = [0, 0], sizes = [1, 32], strides = [1, 1]} : vector<4x32xf32> to vector<1x32xf32>
    %92 = vector.extract_strided_slice %88 {offsets = [1, 0], sizes = [1, 32], strides = [1, 1]} : vector<4x32xf32> to vector<1x32xf32>
    %cst_46 = arith.constant dense<0.000000e+00> : vector<2x8xf32>
    %93 = vector.multi_reduction <add>, %90, %cst_46 [2] : vector<2x8x32xf32> to vector<2x8xf32>
    %94 = vector.shape_cast %93 : vector<2x8xf32> to vector<2x8x1xf32>
    %cst_47 = arith.constant 3.200000e+01 : f32
    %95 = vector.broadcast %cst_47 : f32 to vector<2x8x1xf32>
    %96 = arith.divf %94, %95 : vector<2x8x1xf32>
    %97 = vector.broadcast %96 : vector<2x8x1xf32> to vector<2x8x32xf32>
    %98 = arith.subf %90, %97 : vector<2x8x32xf32>
    %99 = arith.mulf %98, %98 : vector<2x8x32xf32>
    %cst_48 = arith.constant dense<0.000000e+00> : vector<2x8xf32>
    %100 = vector.multi_reduction <add>, %99, %cst_48 [2] : vector<2x8x32xf32> to vector<2x8xf32>
    %101 = vector.shape_cast %100 : vector<2x8xf32> to vector<2x8x1xf32>
    %cst_49 = arith.constant 3.200000e+01 : f32
    %102 = vector.broadcast %cst_49 : f32 to vector<2x8x1xf32>
    %103 = arith.divf %101, %102 : vector<2x8x1xf32>
    %104 = vector.broadcast %96 : vector<2x8x1xf32> to vector<2x8x32xf32>
    %105 = arith.subf %90, %104 : vector<2x8x32xf32>
    %cst_50 = arith.constant 9.99999974E-6 : f32
    %106 = vector.broadcast %cst_50 : f32 to vector<2x8x1xf32>
    %107 = arith.addf %103, %106 : vector<2x8x1xf32>
    %108 = math.rsqrt %107 : vector<2x8x1xf32>
    %109 = vector.broadcast %108 : vector<2x8x1xf32> to vector<2x8x32xf32>
    %110 = arith.mulf %105, %109 : vector<2x8x32xf32>
    %111 = vector.shape_cast %91 : vector<1x32xf32> to vector<1x1x32xf32>
    %112 = vector.broadcast %111 : vector<1x1x32xf32> to vector<2x8x32xf32>
    %113 = arith.mulf %110, %112 : vector<2x8x32xf32>
    %114 = vector.shape_cast %92 : vector<1x32xf32> to vector<1x1x32xf32>
    %115 = vector.broadcast %114 : vector<1x1x32xf32> to vector<2x8x32xf32>
    %116 = arith.addf %113, %115 : vector<2x8x32xf32>
    %117 = vector.broadcast %4 : vector<2x8x1xf32> to vector<2x8x32xf32>
    %118 = arith.mulf %116, %117 : vector<2x8x32xf32>
    %119 = vector.shape_cast %118 : vector<2x8x32xf32> to vector<16x32xf32>
    %120 = arith.truncf %119 : vector<16x32xf32> to vector<16x32xbf16>
    %c0_51 = arith.constant 0 : index
    %c0_52 = arith.constant 0 : index
    %c0_53 = arith.constant 0 : index
    %121 = vector.load %arg10[%c0_51, %c0_52, %c0_53] : memref<1x32x64xbf16, #tpu.memory_space<vmem>>, vector<1x32x64xbf16>
    %122 = vector.shape_cast %121 : vector<1x32x64xbf16> to vector<32x64xbf16>
    %cst_54 = arith.constant dense<0.000000e+00> : vector<16x64xf32>
    %123 = tpu.matmul %120, %122, %cst_54 {dimension_numbers = #tpu.dot_dimension_numbers<[1], [0], [0], [1], [0, 0, 1, 1], [], []>} : vector<16x32xbf16>, vector<32x64xbf16>, vector<16x64xf32> -> vector<16x64xf32>
    %c0_55 = arith.constant 0 : index
    %c0_56 = arith.constant 0 : index
    %c0_57 = arith.constant 0 : index
    %124 = vector.load %arg11[%c0_55, %c0_56, %c0_57] : memref<1x1x64xf32, #tpu.memory_space<vmem>>, vector<1x1x64xf32>
    %125 = vector.shape_cast %124 : vector<1x1x64xf32> to vector<1x64xf32>
    %126 = vector.broadcast %125 : vector<1x64xf32> to vector<16x64xf32>
    %127 = arith.addf %123, %126 : vector<16x64xf32>
    %cst_58 = arith.constant 0.000000e+00 : f32
    %128 = vector.broadcast %cst_58 : f32 to vector<16x64xf32>
    %129 = arith.maximumf %127, %128 : vector<16x64xf32>
    %130 = arith.truncf %129 : vector<16x64xf32> to vector<16x64xbf16>
    %c0_59 = arith.constant 0 : index
    %c0_60 = arith.constant 0 : index
    %c0_61 = arith.constant 0 : index
    %131 = vector.load %arg12[%c0_59, %c0_60, %c0_61] : memref<1x64x32xbf16, #tpu.memory_space<vmem>>, vector<1x64x32xbf16>
    %132 = vector.shape_cast %131 : vector<1x64x32xbf16> to vector<64x32xbf16>
    %cst_62 = arith.constant dense<0.000000e+00> : vector<16x32xf32>
    %133 = tpu.matmul %130, %132, %cst_62 {dimension_numbers = #tpu.dot_dimension_numbers<[1], [0], [0], [1], [0, 0, 1, 1], [], []>} : vector<16x64xbf16>, vector<64x32xbf16>, vector<16x32xf32> -> vector<16x32xf32>
    %c0_63 = arith.constant 0 : index
    %c0_64 = arith.constant 0 : index
    %c0_65 = arith.constant 0 : index
    %134 = vector.load %arg13[%c0_63, %c0_64, %c0_65] : memref<1x1x32xf32, #tpu.memory_space<vmem>>, vector<1x1x32xf32>
    %135 = vector.shape_cast %134 : vector<1x1x32xf32> to vector<1x32xf32>
    %136 = vector.broadcast %135 : vector<1x32xf32> to vector<16x32xf32>
    %137 = arith.addf %133, %136 : vector<16x32xf32>
    %138 = vector.shape_cast %137 : vector<16x32xf32> to vector<2x8x32xf32>
    %139 = arith.addf %138, %118 : vector<2x8x32xf32>
    %140 = vector.extract_strided_slice %88 {offsets = [2, 0], sizes = [1, 32], strides = [1, 1]} : vector<4x32xf32> to vector<1x32xf32>
    %141 = vector.extract_strided_slice %88 {offsets = [3, 0], sizes = [1, 32], strides = [1, 1]} : vector<4x32xf32> to vector<1x32xf32>
    %cst_66 = arith.constant dense<0.000000e+00> : vector<2x8xf32>
    %142 = vector.multi_reduction <add>, %139, %cst_66 [2] : vector<2x8x32xf32> to vector<2x8xf32>
    %143 = vector.shape_cast %142 : vector<2x8xf32> to vector<2x8x1xf32>
    %cst_67 = arith.constant 3.200000e+01 : f32
    %144 = vector.broadcast %cst_67 : f32 to vector<2x8x1xf32>
    %145 = arith.divf %143, %144 : vector<2x8x1xf32>
    %146 = vector.broadcast %145 : vector<2x8x1xf32> to vector<2x8x32xf32>
    %147 = arith.subf %139, %146 : vector<2x8x32xf32>
    %148 = arith.mulf %147, %147 : vector<2x8x32xf32>
    %cst_68 = arith.constant dense<0.000000e+00> : vector<2x8xf32>
    %149 = vector.multi_reduction <add>, %148, %cst_68 [2] : vector<2x8x32xf32> to vector<2x8xf32>
    %150 = vector.shape_cast %149 : vector<2x8xf32> to vector<2x8x1xf32>
    %cst_69 = arith.constant 3.200000e+01 : f32
    %151 = vector.broadcast %cst_69 : f32 to vector<2x8x1xf32>
    %152 = arith.divf %150, %151 : vector<2x8x1xf32>
    %153 = vector.broadcast %145 : vector<2x8x1xf32> to vector<2x8x32xf32>
    %154 = arith.subf %139, %153 : vector<2x8x32xf32>
    %cst_70 = arith.constant 9.99999974E-6 : f32
    %155 = vector.broadcast %cst_70 : f32 to vector<2x8x1xf32>
    %156 = arith.addf %152, %155 : vector<2x8x1xf32>
    %157 = math.rsqrt %156 : vector<2x8x1xf32>
    %158 = vector.broadcast %157 : vector<2x8x1xf32> to vector<2x8x32xf32>
    %159 = arith.mulf %154, %158 : vector<2x8x32xf32>
    %160 = vector.shape_cast %140 : vector<1x32xf32> to vector<1x1x32xf32>
    %161 = vector.broadcast %160 : vector<1x1x32xf32> to vector<2x8x32xf32>
    %162 = arith.mulf %159, %161 : vector<2x8x32xf32>
    %163 = vector.shape_cast %141 : vector<1x32xf32> to vector<1x1x32xf32>
    %164 = vector.broadcast %163 : vector<1x1x32xf32> to vector<2x8x32xf32>
    %165 = arith.addf %162, %164 : vector<2x8x32xf32>
    %166 = vector.broadcast %4 : vector<2x8x1xf32> to vector<2x8x32xf32>
    %167 = arith.mulf %165, %166 : vector<2x8x32xf32>
    %c0_71 = arith.constant 0 : index
    %c0_72 = arith.constant 0 : index
    %c0_73 = arith.constant 0 : index
    %168 = vector.load %arg16[%c0_71, %c0_72, %c0_73] : memref<2x8x32xf32, #tpu.memory_space<vmem>>, vector<2x8x32xf32>
    tpu.vector_store %arg16[%c0_71, %c0_72, %c0_73], %167 {strides = array<i32>} : memref<2x8x32xf32, #tpu.memory_space<vmem>>, vector<2x8x32xf32>,
    %c0_74 = arith.constant 0 : index
    %c0_75 = arith.constant 0 : index
    %c0_76 = arith.constant 0 : index
    %169 = vector.load %arg14[%c0_74, %c0_75, %c0_76] : memref<2x8x32xf32, #tpu.memory_space<vmem>>, vector<2x8x32xf32>
    tpu.vector_store %arg14[%c0_74, %c0_75, %c0_76], %167 {strides = array<i32>} : memref<2x8x32xf32, #tpu.memory_space<vmem>>, vector<2x8x32xf32>,
    return
  }
  func.func @transform_0(%arg0: i32, %arg1: i32) -> (i32, i32, i32) {
    %c0_i32 = arith.constant 0 : i32
    %c0_i32_0 = arith.constant 0 : i32
    %c0_i32_1 = arith.constant 0 : i32
    return %arg0, %c0_i32, %c0_i32_0 : i32, i32, i32
  }
  func.func @transform_1(%arg0: i32, %arg1: i32) -> (i32, i32, i32) {
    %c0_i32 = arith.constant 0 : i32
    %c0_i32_0 = arith.constant 0 : i32
    %c0_i32_1 = arith.constant 0 : i32
    return %arg0, %c0_i32, %c0_i32_0 : i32, i32, i32
  }
  func.func @transform_2(%arg0: i32, %arg1: i32) -> (i32, i32, i32) {
    %c0_i32 = arith.constant 0 : i32
    %c0_i32_0 = arith.constant 0 : i32
    %c0_i32_1 = arith.constant 0 : i32
    return %arg0, %c0_i32, %c0_i32_0 : i32, i32, i32
  }
  func.func @transform_3(%arg0: i32, %arg1: i32) -> (i32, i32, i32) {
    %c0_i32 = arith.constant 0 : i32
    %c0_i32_0 = arith.constant 0 : i32
    %c0_i32_1 = arith.constant 0 : i32
    return %arg1, %c0_i32, %c0_i32_0 : i32, i32, i32
  }
  func.func @transform_4(%arg0: i32, %arg1: i32) -> (i32, i32, i32) {
    %c0_i32 = arith.constant 0 : i32
    %c0_i32_0 = arith.constant 0 : i32
    %c0_i32_1 = arith.constant 0 : i32
    return %arg1, %c0_i32, %c0_i32_0 : i32, i32, i32
  }
  func.func @transform_5(%arg0: i32, %arg1: i32) -> (i32, i32, i32) {
    %c0_i32 = arith.constant 0 : i32
    %c0_i32_0 = arith.constant 0 : i32
    %c0_i32_1 = arith.constant 0 : i32
    return %arg1, %c0_i32, %c0_i32_0 : i32, i32, i32
  }
  func.func @transform_6(%arg0: i32, %arg1: i32) -> (i32, i32, i32) {
    %c0_i32 = arith.constant 0 : i32
    %c0_i32_0 = arith.constant 0 : i32
    %c0_i32_1 = arith.constant 0 : i32
    return %arg1, %c0_i32, %c0_i32_0 : i32, i32, i32
  }
  func.func @transform_7(%arg0: i32, %arg1: i32) -> (i32, i32, i32) {
    %c0_i32 = arith.constant 0 : i32
    %c0_i32_0 = arith.constant 0 : i32
    %c0_i32_1 = arith.constant 0 : i32
    return %arg1, %c0_i32, %c0_i32_0 : i32, i32, i32
  }
  func.func @transform_8(%arg0: i32, %arg1: i32) -> (i32, i32, i32) {
    %c0_i32 = arith.constant 0 : i32
    %c0_i32_0 = arith.constant 0 : i32
    %c0_i32_1 = arith.constant 0 : i32
    return %arg1, %c0_i32, %c0_i32_0 : i32, i32, i32
  }
  func.func @transform_9(%arg0: i32, %arg1: i32) -> (i32, i32, i32) {
    %c0_i32 = arith.constant 0 : i32
    %c0_i32_0 = arith.constant 0 : i32
    %c0_i32_1 = arith.constant 0 : i32
    return %arg1, %c0_i32, %c0_i32_0 : i32, i32, i32
  }
  func.func @transform_10(%arg0: i32, %arg1: i32) -> (i32, i32, i32) {
    %c0_i32 = arith.constant 0 : i32
    %c0_i32_0 = arith.constant 0 : i32
    %c0_i32_1 = arith.constant 0 : i32
    return %arg1, %c0_i32, %c0_i32_0 : i32, i32, i32
  }
  func.func @transform_11(%arg0: i32, %arg1: i32) -> (i32, i32, i32) {
    %c0_i32 = arith.constant 0 : i32
    %c0_i32_0 = arith.constant 0 : i32
    %c0_i32_1 = arith.constant 0 : i32
    return %arg1, %c0_i32, %c0_i32_0 : i32, i32, i32
  }
  func.func @transform_12(%arg0: i32, %arg1: i32) -> (i32, i32, i32) {
    %c0_i32 = arith.constant 0 : i32
    %c0_i32_0 = arith.constant 0 : i32
    %c0_i32_1 = arith.constant 0 : i32
    return %arg0, %c0_i32, %c0_i32_0 : i32, i32, i32
  }
  func.func @transform_13(%arg0: i32, %arg1: i32) -> (i32, i32, i32, i32) {
    %c0_i32 = arith.constant 0 : i32
    %c0_i32_0 = arith.constant 0 : i32
    %c0_i32_1 = arith.constant 0 : i32
    return %arg1, %arg0, %c0_i32, %c0_i32_0 : i32, i32, i32, i32
  }
}

</mosaic_0001>

<llo_original>
// kernel: syn_trf_encoder_forward.1
$region0: #{syn_trf_encoder_forward.1}
  #allocation0 [shape = 'u32[]', space=smem, size = 0x4, offset = 0x4, fixed_abs, tag = 'smem constant byte address 0x4 - core index']
  #allocation1 [shape = 'u32[144,128]{1,0:T(1,128)}', space=vmem, size = 0x12000, scoped, tag = 'internal scratch']
  #allocation2 [shape = 'f32[2,8,32]{2,1,0:T(8,128)}', space=vmem, size = 0x2000, scoped, tag = 'scratch operand']
  #allocation3 [shape = 'f32[16,32]{1,0:T(8,128)}', space=vmem, size = 0x2000, scoped, tag = 'scratch operand']
  %s0 = inlined_call_operand.vmem [shape: f32[2,8,32], index: 0, kind: input, shape index: {}]
  %s1 = inlined_call_operand.vmem [shape: bf16[2,8,8], index: 1, kind: input, shape index: {}]
  %s2 = inlined_call_operand.vmem [shape: f32[2,8,1], index: 2, kind: input, shape index: {}]
  %s3 = inlined_call_operand.vmem [shape: bf16[2,32,96], index: 3, kind: input, shape index: {}]
  %s4 = inlined_call_operand.vmem [shape: f32[2,1,96], index: 4, kind: input, shape index: {}]
  %s5 = inlined_call_operand.vmem [shape: bf16[2,32,32], index: 5, kind: input, shape index: {}]
  %s6 = inlined_call_operand.vmem [shape: f32[2,1,32], index: 6, kind: input, shape index: {}]
  %s7 = inlined_call_operand.vmem [shape: f32[2,4,32], index: 7, kind: input, shape index: {}]
  %s8 = inlined_call_operand.vmem [shape: bf16[2,32,64], index: 8, kind: input, shape index: {}]
  %s9 = inlined_call_operand.vmem [shape: f32[2,1,64], index: 9, kind: input, shape index: {}]
  %s10 = inlined_call_operand.vmem [shape: bf16[2,64,32], index: 10, kind: input, shape index: {}]
  %s11 = inlined_call_operand.vmem [shape: f32[2,1,32], index: 11, kind: input, shape index: {}]
  %s12 = inlined_call_operand.hbm [shape: f32[2,8,32], index: 12, kind: output, shape index: {0}]
  %s13 = inlined_call_operand.vmem [shape: f32[4,2,8,8], index: 13, kind: output, shape index: {1}]
  %14 = xla_tuple %s12, %s13
  %s15 = sld [smem:[#allocation0]]
  $region93: #{syn_trf_encoder_forward.1} parent=0
    _
  %s17 = ssub.s32 1, %s15
  %s18 = scalar_select 0, %s17, %s15
  $region1: #{syn_trf_encoder_forward.1} parent=0
    #allocation4 [shape = 'u8[8192]{0}', space=vmem, size = 0x2000, scoped, tag = 'output window, operand 0, single buffered']
    #allocation5 [shape = 's32[2]{0}', space=sflag, size = 0x8, scoped, tag = 'scoped memory for syn_trf_encoder_forward.1']
    %19 = vsyncpa [#allocation5], 0
    loop: start=0, step=1, limit=4
    $region2: #{syn_trf_encoder_forward.1} parent=1 // loop_pre_header
      _
    $region3: #{syn_trf_encoder_forward.1} parent=1 // loop_header
      %s21 = sphi 0, %s25
      %p22 = scmp.ge.s32.totalorder %s21, 4
      %s28 = sphi 0, %s40
      %s29 = sphi 0, %s36
      %s30 = sphi 0, %s28
      %s31 = sphi 0, %s29
      %s32 = sphi 0, %s30
      %s33 = sphi 0, %s31
      %s43 = sphi 0, %s45
      %s46 = sphi 0, %s43
      %s47 = sphi 0, %s46
      %s63 = sphi 0, %s47
      %s69 = sphi 0, %s71
      %s72 = sphi 0, %s69
      %s73 = sphi 0, %s72
      %s89 = sphi 0, %s73
      %s95 = sphi 0, %s97
      %s98 = sphi 0, %s95
      %s99 = sphi 0, %s98
      %s115 = sphi 0, %s99
      %s121 = sphi 0, %s123
      %s124 = sphi 0, %s121
      %s125 = sphi 0, %s124
      %s141 = sphi 0, %s125
      %s147 = sphi 0, %s149
      %s150 = sphi 0, %s147
      %s151 = sphi 0, %s150
      %s167 = sphi 0, %s151
      %s173 = sphi 0, %s175
      %s176 = sphi 0, %s173
      %s177 = sphi 0, %s176
      %s193 = sphi 0, %s177
      %s199 = sphi 0, %s201
      %s202 = sphi 0, %s199
      %s203 = sphi 0, %s202
      %s219 = sphi 0, %s203
      %s225 = sphi 0, %s227
      %s228 = sphi 0, %s225
      %s229 = sphi 0, %s228
      %s245 = sphi 0, %s229
      %s251 = sphi 0, %s253
      %s254 = sphi 0, %s251
      %s255 = sphi 0, %s254
      %s271 = sphi 0, %s255
      %s277 = sphi 0, %s279
      %s280 = sphi 0, %s277
      %s281 = sphi 0, %s280
      %s297 = sphi 0, %s281
      %s303 = sphi 0, %s305
      %s306 = sphi 0, %s303
      %s307 = sphi 0, %s306
      %s323 = sphi 0, %s307
      %s329 = sphi 0, %s331
      %s332 = sphi 0, %s329
      %s333 = sphi 0, %s332
      %s349 = sphi 0, %s333
      %s355 = sphi 0, %s357
      %s358 = sphi 0, %s355
      %s359 = sphi 0, %s358
      %s375 = sphi 0, %s359
      %s383 = sphi 0, %s385
      %s386 = sphi 0, %s383
      %s387 = sphi 0, %s386
      %s403 = sphi 0, %s387
    $region4: #{syn_trf_encoder_forward.1} parent=1 // loop_header_branch
      %24 = sbr.rel (%p22) target = $region8
    $region5: #{syn_trf_encoder_forward.1} parent=1 // loop_body
      %s26 = ssub.s32 %s21, 1
      %s27 = ssub.s32 %s21, 2
      %s34 = sadd.s32 1, %s29
      %p35 = scmp.ge.s32.totalorder %s34, 2
      %s36 = scalar_select %p35, 0, %s34
      %s37 = sadd.s32 1, %s28
      %s38 = scalar_select %p35, %s37, %s28
      %p39 = scmp.ge.s32.totalorder %s38, 1
      %s40 = scalar_select %p39, 0, %s38
      %s41 = ssub.s32 %s28, %s40
      %p42 = scmp.eq.s32.totalorder %s41, 0
      %s44 = sadd.s32 %s43, 1
      %s45 = scalar_select %p42, %s43, %s44
      %p48 = pneg %p42
      %p49 = scmp.eq.s32.totalorder %s21, 1
      %p50 = por %p48, %p49
      %p51 = scmp.ne.s32.totalorder %s43, %s46
      %p52 = scmp.eq.s32.totalorder %s21, 0
      %p53 = por %p51, %p52
      %p54 = scmp.ne.s32.totalorder %s43, %s46
      %p55 = scmp.eq.s32.totalorder %s26, 1
      %p56 = por %p54, %p55
      %p57 = scmp.ne.s32.totalorder %s46, %s47
      %p58 = scmp.eq.s32.totalorder %s26, 0
      %p59 = por %p57, %p58
      %p60 = scmp.ne.s32.totalorder %s46, %s47
      %p61 = scmp.eq.s32.totalorder %s27, 1
      %p62 = por %p60, %p61
      %p64 = scmp.ne.s32.totalorder %s47, %s63
      %p65 = scmp.eq.s32.totalorder %s27, 0
      %p66 = por %p64, %p65
      %s67 = ssub.s32 %s28, %s40
      %p68 = scmp.eq.s32.totalorder %s67, 0
      %s70 = sadd.s32 %s69, 1
      %s71 = scalar_select %p68, %s69, %s70
      %p74 = pneg %p68
      %p75 = scmp.eq.s32.totalorder %s21, 1
      %p76 = por %p74, %p75
      %p77 = scmp.ne.s32.totalorder %s69, %s72
      %p78 = scmp.eq.s32.totalorder %s21, 0
      %p79 = por %p77, %p78
      %p80 = scmp.ne.s32.totalorder %s69, %s72
      %p81 = scmp.eq.s32.totalorder %s26, 1
      %p82 = por %p80, %p81
      %p83 = scmp.ne.s32.totalorder %s72, %s73
      %p84 = scmp.eq.s32.totalorder %s26, 0
      %p85 = por %p83, %p84
      %p86 = scmp.ne.s32.totalorder %s72, %s73
      %p87 = scmp.eq.s32.totalorder %s27, 1
      %p88 = por %p86, %p87
      %p90 = scmp.ne.s32.totalorder %s73, %s89
      %p91 = scmp.eq.s32.totalorder %s27, 0
      %p92 = por %p90, %p91
      %s93 = ssub.s32 %s28, %s40
      %p94 = scmp.eq.s32.totalorder %s93, 0
      %s96 = sadd.s32 %s95, 1
      %s97 = scalar_select %p94, %s95, %s96
      %p100 = pneg %p94
      %p101 = scmp.eq.s32.totalorder %s21, 1
      %p102 = por %p100, %p101
      %p103 = scmp.ne.s32.totalorder %s95, %s98
      %p104 = scmp.eq.s32.totalorder %s21, 0
      %p105 = por %p103, %p104
      %p106 = scmp.ne.s32.totalorder %s95, %s98
      %p107 = scmp.eq.s32.totalorder %s26, 1
      %p108 = por %p106, %p107
      %p109 = scmp.ne.s32.totalorder %s98, %s99
      %p110 = scmp.eq.s32.totalorder %s26, 0
      %p111 = por %p109, %p110
      %p112 = scmp.ne.s32.totalorder %s98, %s99
      %p113 = scmp.eq.s32.totalorder %s27, 1
      %p114 = por %p112, %p113
      %p116 = scmp.ne.s32.totalorder %s99, %s115
      %p117 = scmp.eq.s32.totalorder %s27, 0
      %p118 = por %p116, %p117
      %s119 = ssub.s32 %s29, %s36
      %p120 = scmp.eq.s32.totalorder %s119, 0
      %s122 = sadd.s32 %s121, 1
      %s123 = scalar_select %p120, %s121, %s122
      %p126 = pneg %p120
      %p127 = scmp.eq.s32.totalorder %s21, 1
      %p128 = por %p126, %p127
      %p129 = scmp.ne.s32.totalorder %s121, %s124
      %p130 = scmp.eq.s32.totalorder %s21, 0
      %p131 = por %p129, %p130
      %p132 = scmp.ne.s32.totalorder %s121, %s124
      %p133 = scmp.eq.s32.totalorder %s26, 1
      %p134 = por %p132, %p133
      %p135 = scmp.ne.s32.totalorder %s124, %s125
      %p136 = scmp.eq.s32.totalorder %s26, 0
      %p137 = por %p135, %p136
      %p138 = scmp.ne.s32.totalorder %s124, %s125
      %p139 = scmp.eq.s32.totalorder %s27, 1
      %p140 = por %p138, %p139
      %p142 = scmp.ne.s32.totalorder %s125, %s141
      %p143 = scmp.eq.s32.totalorder %s27, 0
      %p144 = por %p142, %p143
      %s145 = ssub.s32 %s29, %s36
      %p146 = scmp.eq.s32.totalorder %s145, 0
      %s148 = sadd.s32 %s147, 1
      %s149 = scalar_select %p146, %s147, %s148
      %p152 = pneg %p146
      %p153 = scmp.eq.s32.totalorder %s21, 1
      %p154 = por %p152, %p153
      %p155 = scmp.ne.s32.totalorder %s147, %s150
      %p156 = scmp.eq.s32.totalorder %s21, 0
      %p157 = por %p155, %p156
      %p158 = scmp.ne.s32.totalorder %s147, %s150
      %p159 = scmp.eq.s32.totalorder %s26, 1
      %p160 = por %p158, %p159
      %p161 = scmp.ne.s32.totalorder %s150, %s151
      %p162 = scmp.eq.s32.totalorder %s26, 0
      %p163 = por %p161, %p162
      %p164 = scmp.ne.s32.totalorder %s150, %s151
      %p165 = scmp.eq.s32.totalorder %s27, 1
      %p166 = por %p164, %p165
      %p168 = scmp.ne.s32.totalorder %s151, %s167
      %p169 = scmp.eq.s32.totalorder %s27, 0
      %p170 = por %p168, %p169
      %s171 = ssub.s32 %s29, %s36
      %p172 = scmp.eq.s32.totalorder %s171, 0
      %s174 = sadd.s32 %s173, 1
      %s175 = scalar_select %p172, %s173, %s174
      %p178 = pneg %p172
      %p179 = scmp.eq.s32.totalorder %s21, 1
      %p180 = por %p178, %p179
      %p181 = scmp.ne.s32.totalorder %s173, %s176
      %p182 = scmp.eq.s32.totalorder %s21, 0
      %p183 = por %p181, %p182
      %p184 = scmp.ne.s32.totalorder %s173, %s176
      %p185 = scmp.eq.s32.totalorder %s26, 1
      %p186 = por %p184, %p185
      %p187 = scmp.ne.s32.totalorder %s176, %s177
      %p188 = scmp.eq.s32.totalorder %s26, 0
      %p189 = por %p187, %p188
      %p190 = scmp.ne.s32.totalorder %s176, %s177
      %p191 = scmp.eq.s32.totalorder %s27, 1
      %p192 = por %p190, %p191
      %p194 = scmp.ne.s32.totalorder %s177, %s193
      %p195 = scmp.eq.s32.totalorder %s27, 0
      %p196 = por %p194, %p195
      %s197 = ssub.s32 %s29, %s36
      %p198 = scmp.eq.s32.totalorder %s197, 0
      %s200 = sadd.s32 %s199, 1
      %s201 = scalar_select %p198, %s199, %s200
      %p204 = pneg %p198
      %p205 = scmp.eq.s32.totalorder %s21, 1
      %p206 = por %p204, %p205
      %p207 = scmp.ne.s32.totalorder %s199, %s202
      %p208 = scmp.eq.s32.totalorder %s21, 0
      %p209 = por %p207, %p208
      %p210 = scmp.ne.s32.totalorder %s199, %s202
      %p211 = scmp.eq.s32.totalorder %s26, 1
      %p212 = por %p210, %p211
      %p213 = scmp.ne.s32.totalorder %s202, %s203
      %p214 = scmp.eq.s32.totalorder %s26, 0
      %p215 = por %p213, %p214
      %p216 = scmp.ne.s32.totalorder %s202, %s203
      %p217 = scmp.eq.s32.totalorder %s27, 1
      %p218 = por %p216, %p217
      %p220 = scmp.ne.s32.totalorder %s203, %s219
      %p221 = scmp.eq.s32.totalorder %s27, 0
      %p222 = por %p220, %p221
      %s223 = ssub.s32 %s29, %s36
      %p224 = scmp.eq.s32.totalorder %s223, 0
      %s226 = sadd.s32 %s225, 1
      %s227 = scalar_select %p224, %s225, %s226
      %p230 = pneg %p224
      %p231 = scmp.eq.s32.totalorder %s21, 1
      %p232 = por %p230, %p231
      %p233 = scmp.ne.s32.totalorder %s225, %s228
      %p234 = scmp.eq.s32.totalorder %s21, 0
      %p235 = por %p233, %p234
      %p236 = scmp.ne.s32.totalorder %s225, %s228
      %p237 = scmp.eq.s32.totalorder %s26, 1
      %p238 = por %p236, %p237
      %p239 = scmp.ne.s32.totalorder %s228, %s229
      %p240 = scmp.eq.s32.totalorder %s26, 0
      %p241 = por %p239, %p240
      %p242 = scmp.ne.s32.totalorder %s228, %s229
      %p243 = scmp.eq.s32.totalorder %s27, 1
      %p244 = por %p242, %p243
      %p246 = scmp.ne.s32.totalorder %s229, %s245
      %p247 = scmp.eq.s32.totalorder %s27, 0
      %p248 = por %p246, %p247
      %s249 = ssub.s32 %s29, %s36
      %p250 = scmp.eq.s32.totalorder %s249, 0
      %s252 = sadd.s32 %s251, 1
      %s253 = scalar_select %p250, %s251, %s252
      %p256 = pneg %p250
      %p257 = scmp.eq.s32.totalorder %s21, 1
      %p258 = por %p256, %p257
      %p259 = scmp.ne.s32.totalorder %s251, %s254
      %p260 = scmp.eq.s32.totalorder %s21, 0
      %p261 = por %p259, %p260
      %p262 = scmp.ne.s32.totalorder %s251, %s254
      %p263 = scmp.eq.s32.totalorder %s26, 1
      %p264 = por %p262, %p263
      %p265 = scmp.ne.s32.totalorder %s254, %s255
      %p266 = scmp.eq.s32.totalorder %s26, 0
      %p267 = por %p265, %p266
      %p268 = scmp.ne.s32.totalorder %s254, %s255
      %p269 = scmp.eq.s32.totalorder %s27, 1
      %p270 = por %p268, %p269
      %p272 = scmp.ne.s32.totalorder %s255, %s271
      %p273 = scmp.eq.s32.totalorder %s27, 0
      %p274 = por %p272, %p273
      %s275 = ssub.s32 %s29, %s36
      %p276 = scmp.eq.s32.totalorder %s275, 0
      %s278 = sadd.s32 %s277, 1
      %s279 = scalar_select %p276, %s277, %s278
      %p282 = pneg %p276
      %p283 = scmp.eq.s32.totalorder %s21, 1
      %p284 = por %p282, %p283
      %p285 = scmp.ne.s32.totalorder %s277, %s280
      %p286 = scmp.eq.s32.totalorder %s21, 0
      %p287 = por %p285, %p286
      %p288 = scmp.ne.s32.totalorder %s277, %s280
      %p289 = scmp.eq.s32.totalorder %s26, 1
      %p290 = por %p288, %p289
      %p291 = scmp.ne.s32.totalorder %s280, %s281
      %p292 = scmp.eq.s32.totalorder %s26, 0
      %p293 = por %p291, %p292
      %p294 = scmp.ne.s32.totalorder %s280, %s281
      %p295 = scmp.eq.s32.totalorder %s27, 1
      %p296 = por %p294, %p295
      %p298 = scmp.ne.s32.totalorder %s281, %s297
      %p299 = scmp.eq.s32.totalorder %s27, 0
      %p300 = por %p298, %p299
      %s301 = ssub.s32 %s29, %s36
      %p302 = scmp.eq.s32.totalorder %s301, 0
      %s304 = sadd.s32 %s303, 1
      %s305 = scalar_select %p302, %s303, %s304
      %p308 = pneg %p302
      %p309 = scmp.eq.s32.totalorder %s21, 1
      %p310 = por %p308, %p309
      %p311 = scmp.ne.s32.totalorder %s303, %s306
      %p312 = scmp.eq.s32.totalorder %s21, 0
      %p313 = por %p311, %p312
      %p314 = scmp.ne.s32.totalorder %s303, %s306
      %p315 = scmp.eq.s32.totalorder %s26, 1
      %p316 = por %p314, %p315
      %p317 = scmp.ne.s32.totalorder %s306, %s307
      %p318 = scmp.eq.s32.totalorder %s26, 0
      %p319 = por %p317, %p318
      %p320 = scmp.ne.s32.totalorder %s306, %s307
      %p321 = scmp.eq.s32.totalorder %s27, 1
      %p322 = por %p320, %p321
      %p324 = scmp.ne.s32.totalorder %s307, %s323
      %p325 = scmp.eq.s32.totalorder %s27, 0
      %p326 = por %p324, %p325
      %s327 = ssub.s32 %s29, %s36
      %p328 = scmp.eq.s32.totalorder %s327, 0
      %s330 = sadd.s32 %s329, 1
      %s331 = scalar_select %p328, %s329, %s330
      %p334 = pneg %p328
      %p335 = scmp.eq.s32.totalorder %s21, 1
      %p336 = por %p334, %p335
      %p337 = scmp.ne.s32.totalorder %s329, %s332
      %p338 = scmp.eq.s32.totalorder %s21, 0
      %p339 = por %p337, %p338
      %p340 = scmp.ne.s32.totalorder %s329, %s332
      %p341 = scmp.eq.s32.totalorder %s26, 1
      %p342 = por %p340, %p341
      %p343 = scmp.ne.s32.totalorder %s332, %s333
      %p344 = scmp.eq.s32.totalorder %s26, 0
      %p345 = por %p343, %p344
      %p346 = scmp.ne.s32.totalorder %s332, %s333
      %p347 = scmp.eq.s32.totalorder %s27, 1
      %p348 = por %p346, %p347
      %p350 = scmp.ne.s32.totalorder %s333, %s349
      %p351 = scmp.eq.s32.totalorder %s27, 0
      %p352 = por %p350, %p351
      %s353 = ssub.s32 %s28, %s40
      %p354 = scmp.eq.s32.totalorder %s353, 0
      %s356 = sadd.s32 %s355, 1
      %s357 = scalar_select %p354, %s355, %s356
      %p360 = pneg %p354
      %p361 = scmp.eq.s32.totalorder %s21, 1
      %p362 = por %p360, %p361
      %p363 = scmp.ne.s32.totalorder %s355, %s358
      %p364 = scmp.eq.s32.totalorder %s21, 0
      %p365 = por %p363, %p364
      %p366 = scmp.ne.s32.totalorder %s355, %s358
      %p367 = scmp.eq.s32.totalorder %s26, 1
      %p368 = por %p366, %p367
      %p369 = scmp.ne.s32.totalorder %s358, %s359
      %p370 = scmp.eq.s32.totalorder %s26, 0
      %p371 = por %p369, %p370
      %p372 = scmp.ne.s32.totalorder %s358, %s359
      %p373 = scmp.eq.s32.totalorder %s27, 1
      %p374 = por %p372, %p373
      %p376 = scmp.ne.s32.totalorder %s359, %s375
      %p377 = scmp.eq.s32.totalorder %s27, 0
      %p378 = por %p376, %p377
      %s379 = ssub.s32 %s29, %s36
      %s380 = ssub.s32 %s28, %s40
      %s381 = sor.u32 %s379, %s380
      %p382 = scmp.eq.s32.totalorder %s381, 0
      %s384 = sadd.s32 %s383, 1
      %s385 = scalar_select %p382, %s383, %s384
      %p388 = pneg %p382
      %p389 = scmp.eq.s32.totalorder %s21, 1
      %p390 = por %p388, %p389
      %p391 = scmp.ne.s32.totalorder %s383, %s386
      %p392 = scmp.eq.s32.totalorder %s21, 0
      %p393 = por %p391, %p392
      %p394 = scmp.ne.s32.totalorder %s383, %s386
      %p395 = scmp.eq.s32.totalorder %s26, 1
      %p396 = por %p394, %p395
      %p397 = scmp.ne.s32.totalorder %s386, %s387
      %p398 = scmp.eq.s32.totalorder %s26, 0
      %p399 = por %p397, %p398
      %p400 = scmp.ne.s32.totalorder %s386, %s387
      %p401 = scmp.eq.s32.totalorder %s27, 1
      %p402 = por %p400, %p401
      %p404 = scmp.ne.s32.totalorder %s387, %s403
      %p405 = scmp.eq.s32.totalorder %s27, 0
      %p406 = por %p404, %p405
      %p407 = scmp.le.s32.totalorder 1, %s21
      %p408 = scmp.lt.s32.totalorder %s21, 3
      %p409 = pnand %p407, %p408
      %p410 = pneg %p409
      // Predicated region
      $region9: #{syn_trf_encoder_forward.1} parent=5 // pred_check
        _
      $region10: #{syn_trf_encoder_forward.1} parent=5 // pred_check_branch
        %412 = sbr.rel (%p409) target = $region12
      $region11: #{syn_trf_encoder_forward.1} parent=5 // pred_region
        %s413 = ssub.s32 %s21, 1
        // Predicated region
        $region13: #{syn_trf_encoder_forward.1} parent=11 // pred_check
          %p414 = pneg %p59
        $region14: #{syn_trf_encoder_forward.1} parent=11 // pred_check_branch
          %416 = sbr.rel (%p414) target = $region16
        $region15: #{syn_trf_encoder_forward.1} parent=11 // pred_region
          %s417 = smul.u32 2, %s30
          %p418 = scmp.lt.s32.totalorder %s417, 1
          %s419 = scalar_select %p418, %s417, 1
          %s420 = smul.addr %s419, 8
          %s421 = scalar_lea.vmem %s0, %s420
          %s422 = smul.u32 2, %s30
        $region16: #{syn_trf_encoder_forward.1} parent=11 // pred_fallthru
          _
        // Predicated region
        $region17: #{syn_trf_encoder_forward.1} parent=11 // pred_check
          %p423 = pneg %p85
        $region18: #{syn_trf_encoder_forward.1} parent=11 // pred_check_branch
          %425 = sbr.rel (%p423) target = $region20
        $region19: #{syn_trf_encoder_forward.1} parent=11 // pred_region
          %s426 = smul.u32 2, %s30
          %p427 = scmp.lt.s32.totalorder %s426, 1
          %s428 = scalar_select %p427, %s426, 1
          %s429 = smul.addr %s428, 4
          %s430 = scalar_lea.vmem %s1, %s429
          %s431 = smul.u32 2, %s30
        $region20: #{syn_trf_encoder_forward.1} parent=11 // pred_fallthru
          _
        // Predicated region
        $region21: #{syn_trf_encoder_forward.1} parent=11 // pred_check
          %p432 = pneg %p111
        $region22: #{syn_trf_encoder_forward.1} parent=11 // pred_check_branch
          %434 = sbr.rel (%p432) target = $region24
        $region23: #{syn_trf_encoder_forward.1} parent=11 // pred_region
          %s435 = smul.u32 2, %s30
          %p436 = scmp.lt.s32.totalorder %s435, 1
          %s437 = scalar_select %p436, %s435, 1
          %s438 = smul.addr %s437, 8
          %s439 = scalar_lea.vmem %s2, %s438
          %s440 = smul.u32 2, %s30
        $region24: #{syn_trf_encoder_forward.1} parent=11 // pred_fallthru
          _
      $region12: #{syn_trf_encoder_forward.1} parent=5 // pred_fallthru
        _
      %p441 = scmp.lt.s32.totalorder %s21, 2
      // Predicated region
      $region25: #{syn_trf_encoder_forward.1} parent=5 // pred_check
        %p442 = pneg %p441
      $region26: #{syn_trf_encoder_forward.1} parent=5 // pred_check_branch
        %444 = sbr.rel (%p442) target = $region28
      $region27: #{syn_trf_encoder_forward.1} parent=5 // pred_region
        // Predicated region
        $region29: #{syn_trf_encoder_forward.1} parent=27 // pred_check
          %p445 = pneg %p131
        $region30: #{syn_trf_encoder_forward.1} parent=27 // pred_check_branch
          %447 = sbr.rel (%p445) target = $region32
        $region31: #{syn_trf_encoder_forward.1} parent=27 // pred_region
          %p448 = scmp.lt.s32.totalorder %s29, 1
          %s449 = scalar_select %p448, %s29, 1
          %s450 = smul.addr %s449, 4
          %s451 = smul.addr %s450, 4
          %s452 = scalar_lea.vmem %s3, %s451
        $region32: #{syn_trf_encoder_forward.1} parent=27 // pred_fallthru
          _
        // Predicated region
        $region33: #{syn_trf_encoder_forward.1} parent=27 // pred_check
          %p453 = pneg %p157
        $region34: #{syn_trf_encoder_forward.1} parent=27 // pred_check_branch
          %455 = sbr.rel (%p453) target = $region36
        $region35: #{syn_trf_encoder_forward.1} parent=27 // pred_region
          %p456 = scmp.lt.s32.totalorder %s29, 1
          %s457 = scalar_select %p456, %s29, 1
          %s458 = scalar_lea.vmem %s4, %s457
        $region36: #{syn_trf_encoder_forward.1} parent=27 // pred_fallthru
          _
        // Predicated region
        $region37: #{syn_trf_encoder_forward.1} parent=27 // pred_check
          %p459 = pneg %p183
        $region38: #{syn_trf_encoder_forward.1} parent=27 // pred_check_branch
          %461 = sbr.rel (%p459) target = $region40
        $region39: #{syn_trf_encoder_forward.1} parent=27 // pred_region
          %p462 = scmp.lt.s32.totalorder %s29, 1
          %s463 = scalar_select %p462, %s29, 1
          %s464 = smul.addr %s463, 4
          %s465 = smul.addr %s464, 4
          %s466 = scalar_lea.vmem %s5, %s465
        $region40: #{syn_trf_encoder_forward.1} parent=27 // pred_fallthru
          _
        // Predicated region
        $region41: #{syn_trf_encoder_forward.1} parent=27 // pred_check
          %p467 = pneg %p209
        $region42: #{syn_trf_encoder_forward.1} parent=27 // pred_check_branch
          %469 = sbr.rel (%p467) target = $region44
        $region43: #{syn_trf_encoder_forward.1} parent=27 // pred_region
          %p470 = scmp.lt.s32.totalorder %s29, 1
          %s471 = scalar_select %p470, %s29, 1
          %s472 = scalar_lea.vmem %s6, %s471
        $region44: #{syn_trf_encoder_forward.1} parent=27 // pred_fallthru
          _
        // Predicated region
        $region45: #{syn_trf_encoder_forward.1} parent=27 // pred_check
          %p473 = pneg %p235
        $region46: #{syn_trf_encoder_forward.1} parent=27 // pred_check_branch
          %475 = sbr.rel (%p473) target = $region48
        $region47: #{syn_trf_encoder_forward.1} parent=27 // pred_region
          %p476 = scmp.lt.s32.totalorder %s29, 1
          %s477 = scalar_select %p476, %s29, 1
          %s478 = smul.addr %s477, 4
          %s479 = scalar_lea.vmem %s7, %s478
        $region48: #{syn_trf_encoder_forward.1} parent=27 // pred_fallthru
          _
        // Predicated region
        $region49: #{syn_trf_encoder_forward.1} parent=27 // pred_check
          %p480 = pneg %p261
        $region50: #{syn_trf_encoder_forward.1} parent=27 // pred_check_branch
          %482 = sbr.rel (%p480) target = $region52
        $region51: #{syn_trf_encoder_forward.1} parent=27 // pred_region
          %p483 = scmp.lt.s32.totalorder %s29, 1
          %s484 = scalar_select %p483, %s29, 1
          %s485 = smul.addr %s484, 4
          %s486 = smul.addr %s485, 4
          %s487 = scalar_lea.vmem %s8, %s486
        $region52: #{syn_trf_encoder_forward.1} parent=27 // pred_fallthru
          _
        // Predicated region
        $region53: #{syn_trf_encoder_forward.1} parent=27 // pred_check
          %p488 = pneg %p287
        $region54: #{syn_trf_encoder_forward.1} parent=27 // pred_check_branch
          %490 = sbr.rel (%p488) target = $region56
        $region55: #{syn_trf_encoder_forward.1} parent=27 // pred_region
          %p491 = scmp.lt.s32.totalorder %s29, 1
          %s492 = scalar_select %p491, %s29, 1
          %s493 = scalar_lea.vmem %s9, %s492
        $region56: #{syn_trf_encoder_forward.1} parent=27 // pred_fallthru
          _
        // Predicated region
        $region57: #{syn_trf_encoder_forward.1} parent=27 // pred_check
          %p494 = pneg %p313
        $region58: #{syn_trf_encoder_forward.1} parent=27 // pred_check_branch
          %496 = sbr.rel (%p494) target = $region60
        $region59: #{syn_trf_encoder_forward.1} parent=27 // pred_region
          %p497 = scmp.lt.s32.totalorder %s29, 1
          %s498 = scalar_select %p497, %s29, 1
          %s499 = smul.addr %s498, 8
          %s500 = smul.addr %s499, 4
          %s501 = scalar_lea.vmem %s10, %s500
        $region60: #{syn_trf_encoder_forward.1} parent=27 // pred_fallthru
          _
        // Predicated region
        $region61: #{syn_trf_encoder_forward.1} parent=27 // pred_check
          %p502 = pneg %p339
        $region62: #{syn_trf_encoder_forward.1} parent=27 // pred_check_branch
          %504 = sbr.rel (%p502) target = $region64
        $region63: #{syn_trf_encoder_forward.1} parent=27 // pred_region
          %p505 = scmp.lt.s32.totalorder %s29, 1
          %s506 = scalar_select %p505, %s29, 1
          %s507 = scalar_lea.vmem %s11, %s506
        $region64: #{syn_trf_encoder_forward.1} parent=27 // pred_fallthru
          _
      $region28: #{syn_trf_encoder_forward.1} parent=5 // pred_fallthru
        _
      %p508 = scmp.le.s32.totalorder 1, %s21
      %p509 = scmp.lt.s32.totalorder %s21, 3
      %p510 = pnand %p508, %p509
      %p511 = pneg %p510
      // Predicated region
      $region65: #{syn_trf_encoder_forward.1} parent=5 // pred_check
        _
      $region66: #{syn_trf_encoder_forward.1} parent=5 // pred_check_branch
        %513 = sbr.rel (%p510) target = $region68
      $region67: #{syn_trf_encoder_forward.1} parent=5 // pred_region
        %s514 = ssub.s32 %s21, 1
        %s515 = smul.u32 2, %s30
        %p516 = scmp.lt.s32.totalorder %s515, 1
        %s517 = scalar_select %p516, %s515, 1
        %s518 = smul.addr %s517, 8
        %s519 = scalar_lea.vmem %s0, %s518
        %p520 = pneg %p59
        %p521 = pneg %p56
        %s522 = smul.u32 2, %s30
        %p523 = scmp.lt.s32.totalorder %s522, 1
        %s524 = scalar_select %p523, %s522, 1
        %s525 = smul.addr %s524, 4
        %s526 = scalar_lea.vmem %s1, %s525
        %p527 = pneg %p85
        %p528 = pneg %p82
        %s529 = smul.u32 2, %s30
        %p530 = scmp.lt.s32.totalorder %s529, 1
        %s531 = scalar_select %p530, %s529, 1
        %s532 = smul.addr %s531, 8
        %s533 = scalar_lea.vmem %s2, %s532
        %p534 = pneg %p111
        %p535 = pneg %p108
        %p536 = scmp.lt.s32.totalorder %s31, 1
        %s537 = scalar_select %p536, %s31, 1
        %s538 = smul.addr %s537, 4
        %s539 = smul.addr %s538, 4
        %s540 = scalar_lea.vmem %s3, %s539
        %p541 = pneg %p137
        %p542 = pneg %p134
        %p543 = scmp.lt.s32.totalorder %s31, 1
        %s544 = scalar_select %p543, %s31, 1
        %s545 = scalar_lea.vmem %s4, %s544
        %p546 = pneg %p163
        %p547 = pneg %p160
        %p548 = scmp.lt.s32.totalorder %s31, 1
        %s549 = scalar_select %p548, %s31, 1
        %s550 = smul.addr %s549, 4
        %s551 = smul.addr %s550, 4
        %s552 = scalar_lea.vmem %s5, %s551
        %p553 = pneg %p189
        %p554 = pneg %p186
        %p555 = scmp.lt.s32.totalorder %s31, 1
        %s556 = scalar_select %p555, %s31, 1
        %s557 = scalar_lea.vmem %s6, %s556
        %p558 = pneg %p215
        %p559 = pneg %p212
        %p560 = scmp.lt.s32.totalorder %s31, 1
        %s561 = scalar_select %p560, %s31, 1
        %s562 = smul.addr %s561, 4
        %s563 = scalar_lea.vmem %s7, %s562
        %p564 = pneg %p241
        %p565 = pneg %p238
        %p566 = scmp.lt.s32.totalorder %s31, 1
        %s567 = scalar_select %p566, %s31, 1
        %s568 = smul.addr %s567, 4
        %s569 = smul.addr %s568, 4
        %s570 = scalar_lea.vmem %s8, %s569
        %p571 = pneg %p267
        %p572 = pneg %p264
        %p573 = scmp.lt.s32.totalorder %s31, 1
        %s574 = scalar_select %p573, %s31, 1
        %s575 = scalar_lea.vmem %s9, %s574
        %p576 = pneg %p293
        %p577 = pneg %p290
        %p578 = scmp.lt.s32.totalorder %s31, 1
        %s579 = scalar_select %p578, %s31, 1
        %s580 = smul.addr %s579, 8
        %s581 = smul.addr %s580, 4
        %s582 = scalar_lea.vmem %s10, %s581
        %p583 = pneg %p319
        %p584 = pneg %p316
        %p585 = scmp.lt.s32.totalorder %s31, 1
        %s586 = scalar_select %p585, %s31, 1
        %s587 = scalar_lea.vmem %s11, %s586
        %p588 = pneg %p345
        %p589 = pneg %p342
        %p590 = pneg %p371
        %p591 = pneg %p368
        %p592 = pneg %p399
        %p593 = pneg %p396
        %s594 = smul.u32 2, %s31
        %s595 = smul.u32 2, %s30
        %p596 = scmp.lt.s32.totalorder %s594, 3
        %s597 = scalar_select %p596, %s594, 3
        %p598 = scmp.lt.s32.totalorder %s595, 1
        %s599 = scalar_select %p598, %s595, 1
        %s600 = smul.addr %s597, 2
        %s601 = sadd.s32 %s599, %s600
        %s602 = smul.addr %s601, 8
        %s603 = scalar_lea.vmem %s13, %s602
        %s604 = smul.u32 2, %s30
        %p605 = scmp.lt.s32.totalorder %s604, 1
        %s606 = scalar_select %p605, %s604, 1
        %s607 = smul.addr %s606, 8
        %s608 = scalar_lea.vmem %s0, %s607
        %s609 = smul.u32 2, %s30
        %s610 = smul.u32 2, %s30
        %p611 = scmp.lt.s32.totalorder %s610, 1
        %s612 = scalar_select %p611, %s610, 1
        %s613 = smul.addr %s612, 4
        %s614 = scalar_lea.vmem %s1, %s613
        %s615 = smul.u32 2, %s30
        %s616 = smul.u32 2, %s30
        %p617 = scmp.lt.s32.totalorder %s616, 1
        %s618 = scalar_select %p617, %s616, 1
        %s619 = smul.addr %s618, 8
        %s620 = scalar_lea.vmem %s2, %s619
        %s621 = smul.u32 2, %s30
        %p622 = scmp.lt.s32.totalorder %s31, 1
        %s623 = scalar_select %p622, %s31, 1
        %s624 = smul.addr %s623, 4
        %s625 = smul.addr %s624, 4
        %s626 = scalar_lea.vmem %s3, %s625
        %p627 = scmp.lt.s32.totalorder %s31, 1
        %s628 = scalar_select %p627, %s31, 1
        %s629 = scalar_lea.vmem %s4, %s628
        %p630 = scmp.lt.s32.totalorder %s31, 1
        %s631 = scalar_select %p630, %s31, 1
        %s632 = smul.addr %s631, 4
        %s633 = smul.addr %s632, 4
        %s634 = scalar_lea.vmem %s5, %s633
        %p635 = scmp.lt.s32.totalorder %s31, 1
        %s636 = scalar_select %p635, %s31, 1
        %s637 = scalar_lea.vmem %s6, %s636
        %p638 = scmp.lt.s32.totalorder %s31, 1
        %s639 = scalar_select %p638, %s31, 1
        %s640 = smul.addr %s639, 4
        %s641 = scalar_lea.vmem %s7, %s640
        %p642 = scmp.lt.s32.totalorder %s31, 1
        %s643 = scalar_select %p642, %s31, 1
        %s644 = smul.addr %s643, 4
        %s645 = smul.addr %s644, 4
        %s646 = scalar_lea.vmem %s8, %s645
        %p647 = scmp.lt.s32.totalorder %s31, 1
        %s648 = scalar_select %p647, %s31, 1
        %s649 = scalar_lea.vmem %s9, %s648
        %p650 = scmp.lt.s32.totalorder %s31, 1
        %s651 = scalar_select %p650, %s31, 1
        %s652 = smul.addr %s651, 8
        %s653 = smul.addr %s652, 4
        %s654 = scalar_lea.vmem %s10, %s653
        %p655 = scmp.lt.s32.totalorder %s31, 1
        %s656 = scalar_select %p655, %s31, 1
        %s657 = scalar_lea.vmem %s11, %s656
        %s658 = smul.u32 2, %s30
        %s659 = smul.u32 2, %s31
        %s660 = smul.u32 2, %s30
        %p661 = scmp.lt.s32.totalorder %s659, 3
        %s662 = scalar_select %p661, %s659, 3
        %p663 = scmp.lt.s32.totalorder %s660, 1
        %s664 = scalar_select %p663, %s660, 1
        %s665 = smul.addr %s662, 2
        %s666 = sadd.s32 %s664, %s665
        %s667 = smul.addr %s666, 8
        %s668 = scalar_lea.vmem %s13, %s667
        %s669 = smul.u32 2, %s31
        %s670 = smul.u32 2, %s30
        %p672 = scmp.eq.s32.totalorder %s31, 0
        // Predicated region
        $region69: #{syn_trf_encoder_forward.1} parent=67 // pred_check
          %p673 = pneg %p672
        $region70: #{syn_trf_encoder_forward.1} parent=67 // pred_check_branch
          %675 = sbr.rel (%p673) target = $region72
        $region71: #{syn_trf_encoder_forward.1} parent=67 // pred_region
          %v676 = vld [vmem:[%s608] sm:$0xff]
          %v677 = vld [vmem:[%s608 + $0x8] sm:$0xff]
          %vm678 = vcmask 261120
          %679 = vst.msk [vmem:[#allocation2] sm:$0xff] %vm678, %v676
          %680 = vst.msk [vmem:[#allocation2 + $0x8] sm:$0xff] %vm678, %v677
        $region72: #{syn_trf_encoder_forward.1} parent=67 // pred_fallthru
          _
        %v681 = vld [vmem:[#allocation2] sm:$0xff]
        %v682 = vld [vmem:[#allocation2 + $0x8] sm:$0xff]
        %v683 = vld [vmem:[%s620] sm:$0xff]
        %v684 = vld [vmem:[%s620 + $0x8] sm:$0xff]
        %v685 = vld [vmem:[%s614] sm:$0xf]
        %v686 = vld [vmem:[%s614 + $0x4] sm:$0xf]
        %v687 = vunpack.c.l.bf16 %v685
        %v688 = vunpack.c.l.bf16 %v686
        %v689 = vpack.c.bf16 %v682, %v681
        %v690 = vld [vmem:[%s626] sm:$0xf]
        %v691 = vld [vmem:[%s626 + $0x4] sm:$0xf]
        %v692 = vld [vmem:[%s626 + $0x8] sm:$0xf]
        %v693 = vld [vmem:[%s626 + $0xc] sm:$0xf]
        %v694 = vld [vmem:[%s629] sm:$0x1]
        %v696 = vlaneseq
        %v697 = vshrl.u32 %v696, 7
        %v698 = vsub.s32 0, %v697
        %v699 = vrot.slane %v694, %v698
        %v705 = vunpack.c.l.b16 %v690
        %v706 = vunpack.c.l.b16 %v691
        %v707 = vunpack.c.l.b16 %v692
        %v708 = vunpack.c.l.b16 %v693
        %v709 = vpack.c.b16 %v706, %v705
        %v710 = vpack.c.b16 %v708, %v707
        %vm713 = vcmask 261120
        %v715 = vsel %vm713, %v689, 0
        %717 = vmatprep.subr.bf16.mxu0 0
        %718 = vmatpush1.bf16.msra.mxu0 0
        %719 = vmatprep.subr.bf16.mxu0 0
        %720 = vmatpush1.bf16.msra.mxu0 0
        %721 = vmatprep.subr.bf16.mxu0 0
        %722 = vmatpush1.bf16.msra.mxu0 0
        %723 = vmatprep.subr.bf16.mxu0 0
        %724 = vmatpush1.bf16.msra.mxu0 0
        %725 = vmatprep.subr.bf16.mxu0 0
        %726 = vmatpush1.bf16.msra.mxu0 0
        %727 = vmatprep.subr.bf16.mxu0 0
        %728 = vmatpush1.bf16.msra.mxu0 0
        %729 = vmatprep.subr.bf16.mxu0 0
        %730 = vmatpush1.bf16.msra.mxu0 %v710
        %731 = vmatprep.subr.bf16.mxu0 0
        %732 = vmatpush1.bf16.msra.mxu0 %v709
        %733 = vmatprep.subr.bf16.mxu0 0
        %734 = vmatpush2.bf16.msra.mxu0 0
        %735 = vmatprep.subr.bf16.mxu0 0
        %736 = vmatpush2.bf16.msra.mxu0 0
        %737 = vmatprep.subr.bf16.mxu0 0
        %738 = vmatpush2.bf16.msra.mxu0 0
        %739 = vmatprep.subr.bf16.mxu0 0
        %740 = vmatpush2.bf16.msra.mxu0 0
        %741 = vmatprep.subr.bf16.mxu0 0
        %742 = vmatpush2.bf16.msra.mxu0 0
        %743 = vmatprep.subr.bf16.mxu0 0
        %744 = vmatpush2.bf16.msra.mxu0 0
        %745 = vmatprep.subr.bf16.mxu0 0
        %746 = vmatpush2.bf16.msra.mxu0 0
        %747 = vmatprep.subr.bf16.mxu0 0
        %748 = vmatpush2.bf16.msra.mxu0 0
        %749 = vmatprep.mubr.bf16.mxu0 0
        %750 = vmatmul.mubr.bf16.gmra.mxu0 %v715
        %v751 = vpop.f32.mrf.mxu0
        %v752 = vadd.f32 %v699, %v751
        %v753 = vpop.f32.mrf.mxu0
        %v754 = vpop.f32.mrf.mxu0
        %v755 = vadd.f32 %v699, %v754
        %v756 = vpop.f32.mrf.mxu0
        %757 = vdwg.mxu0
        %v758 = vmul.f32 %v752, 0.25
        %v759 = vmul.f32 %v755, 0.25
        %v760 = vpack.c.bf16 %v759, %v758
        %v761 = vpack.c.bf16 %v755, %v752
        %v763 = vunpack.c.l.b16 %v760
        %v764 = vunpack.c.h.b16 %v760
        %v765 = vpack.c.b16 %v763, %v763
        %v766 = vpack.c.b16 %v764, %v764
        %v768 = vunpack.c.l.b16 %v761
        %v769 = vunpack.c.h.b16 %v761
        %v770 = vpack.c.b16 %v768, %v768
        %771 = vrot.lane.b32.xlu0 %v770, 96
        %v772 = vpop.permute.xlu0 %771
        %vm773 = vcmask 130048
        %v775 = vsel %vm773, %v765, 0
        %v778 = vsel %vm773, %v772, 0
        %780 = vmatprep.subr.bf16.mxu0 0
        %781 = vmatpush1.bf16.xpose.msra.mxu0 0
        %782 = vmatprep.subr.bf16.mxu0 0
        %783 = vmatpush1.bf16.xpose.msra.mxu0 0
        %784 = vmatprep.subr.bf16.mxu0 0
        %785 = vmatpush1.bf16.xpose.msra.mxu0 0
        %786 = vmatprep.subr.bf16.mxu0 0
        %787 = vmatpush1.bf16.xpose.msra.mxu0 0
        %788 = vmatprep.subr.bf16.mxu0 0
        %789 = vmatpush1.bf16.xpose.msra.mxu0 0
        %790 = vmatprep.subr.bf16.mxu0 0
        %791 = vmatpush1.bf16.xpose.msra.mxu0 0
        %792 = vmatprep.subr.bf16.mxu0 0
        %793 = vmatpush1.bf16.xpose.msra.mxu0 0
        %794 = vmatprep.subr.bf16.mxu0 0
        %795 = vmatpush1.bf16.xpose.msra.mxu0 %v778
        %796 = vmatprep.subr.bf16.mxu0 0
        %797 = vmatpush2.bf16.xpose.msra.mxu0 0
        %798 = vmatprep.subr.bf16.mxu0 0
        %799 = vmatpush2.bf16.xpose.msra.mxu0 0
        %800 = vmatprep.subr.bf16.mxu0 0
        %801 = vmatpush2.bf16.xpose.msra.mxu0 0
        %802 = vmatprep.subr.bf16.mxu0 0
        %803 = vmatpush2.bf16.xpose.msra.mxu0 0
        %804 = vmatprep.subr.bf16.mxu0 0
        %805 = vmatpush2.bf16.xpose.msra.mxu0 0
        %806 = vmatprep.subr.bf16.mxu0 0
        %807 = vmatpush2.bf16.xpose.msra.mxu0 0
        %808 = vmatprep.subr.bf16.mxu0 0
        %809 = vmatpush2.bf16.xpose.msra.mxu0 0
        %810 = vmatprep.subr.bf16.mxu0 0
        %811 = vmatpush2.bf16.xpose.msra.mxu0 0
        %812 = vmatprep.mubr.bf16.mxu0 0
        %813 = vmatmul.mubr.bf16.gmra.mxu0 %v775
        %v814 = vpop.f32.mrf.mxu0
        %v815 = vadd.f32 %v687, %v814
        %v816 = vpop.f32.mrf.mxu0
        %v817 = vpop.f32.mrf.mxu0
        %v818 = vpop.f32.mrf.mxu0
        %819 = vdwg.mxu0
        %v820 = vpack.c.b16 %v769, %v769
        %821 = vrot.lane.b32.xlu0 %v820, 96
        %v822 = vpop.permute.xlu0 %821
        %v824 = vsel %vm773, %v766, 0
        %v827 = vsel %vm773, %v822, 0
        %829 = vmatprep.subr.bf16.mxu0 0
        %830 = vmatpush1.bf16.xpose.msra.mxu0 0
        %831 = vmatprep.subr.bf16.mxu0 0
        %832 = vmatpush1.bf16.xpose.msra.mxu0 0
        %833 = vmatprep.subr.bf16.mxu0 0
        %834 = vmatpush1.bf16.xpose.msra.mxu0 0
        %835 = vmatprep.subr.bf16.mxu0 0
        %836 = vmatpush1.bf16.xpose.msra.mxu0 0
        %837 = vmatprep.subr.bf16.mxu0 0
        %838 = vmatpush1.bf16.xpose.msra.mxu0 0
        %839 = vmatprep.subr.bf16.mxu0 0
        %840 = vmatpush1.bf16.xpose.msra.mxu0 0
        %841 = vmatprep.subr.bf16.mxu0 0
        %842 = vmatpush1.bf16.xpose.msra.mxu0 0
        %843 = vmatprep.subr.bf16.mxu0 0
        %844 = vmatpush1.bf16.xpose.msra.mxu0 %v827
        %845 = vmatprep.subr.bf16.mxu0 0
        %846 = vmatpush2.bf16.xpose.msra.mxu0 0
        %847 = vmatprep.subr.bf16.mxu0 0
        %848 = vmatpush2.bf16.xpose.msra.mxu0 0
        %849 = vmatprep.subr.bf16.mxu0 0
        %850 = vmatpush2.bf16.xpose.msra.mxu0 0
        %851 = vmatprep.subr.bf16.mxu0 0
        %852 = vmatpush2.bf16.xpose.msra.mxu0 0
        %853 = vmatprep.subr.bf16.mxu0 0
        %854 = vmatpush2.bf16.xpose.msra.mxu0 0
        %855 = vmatprep.subr.bf16.mxu0 0
        %856 = vmatpush2.bf16.xpose.msra.mxu0 0
        %857 = vmatprep.subr.bf16.mxu0 0
        %858 = vmatpush2.bf16.xpose.msra.mxu0 0
        %859 = vmatprep.subr.bf16.mxu0 0
        %860 = vmatpush2.bf16.xpose.msra.mxu0 0
        %861 = vmatprep.mubr.bf16.mxu0 0
        %862 = vmatmul.mubr.bf16.gmra.mxu0 %v824
        %v863 = vpop.f32.mrf.mxu0
        %v864 = vadd.f32 %v688, %v863
        %v865 = vpop.f32.mrf.mxu0
        %v866 = vpop.f32.mrf.mxu0
        %v867 = vpop.f32.mrf.mxu0
        %868 = vdwg.mxu0
        %vm869 = vcmask 64512
        %v870 = vsel %vm869, %v815, -inf
        %871 = vmax.xlane.f32.xlu0 %v870
        %v872 = vpop.xlane.xlu0 %871
        %v873 = vsel %vm869, %v864, -inf
        %874 = vmax.xlane.f32.xlu0 %v873
        %v875 = vpop.xlane.xlu0 %874
        %v876 = vsub.f32 %v815, %v872
        %v877 = vsub.f32 %v864, %v875
        %v878 = vmul.f32 %v876, 1.442695
        %v879 = vpow.pop %v878
        %v880 = vmul.f32 %v877, 1.442695
        %v881 = vpow.pop %v880
        %v882 = vsel %vm869, %v879, 0.0
        %883 = vadd.xlane.f32.xlu0 %v882
        %v884 = vpop.xlane.xlu0 %883
        %v885 = vsel %vm869, %v881, 0.0
        %886 = vadd.xlane.f32.xlu0 %v885
        %v887 = vpop.xlane.xlu0 %886
        %v888 = vrcp.pop %v884
        %v889 = vrcp.pop %v887
        %v890 = vmul.f32 %v879, %v888
        %v891 = vmul.f32 %v881, %v889
        %893 = vset.pattern.permute.xlu0 0
        %894 = vperm.xlu0 %893, %v683
        %v895 = vpop.permute.xlu0 %894
        %898 = vset.pattern.permute.xlu0 0
        %899 = vperm.xlu0 %898, %v684
        %v900 = vpop.permute.xlu0 %899
        %v902 = vmul.f32 %v890, %v895
        %v903 = vmul.f32 %v891, %v900
        %904 = vst.msk [vmem:[%s668] sm:$0xff] %vm869, %v902
        %905 = vst.msk [vmem:[%s668 + $0x8] sm:$0xff] %vm869, %v903
        %v906 = vpack.c.bf16 %v902, %v902
        %v907 = vpack.c.bf16 %v903, %v903
        %908 = vrot.lane.b32.xlu0 %v770, 64
        %v909 = vpop.permute.xlu0 %908
        %v911 = vsel %vm869, %v906, 0
        %vm913 = vcmask 1043456
        %v915 = vsel %vm913, %v909, 0
        %917 = vmatprep.subr.bf16.mxu0 0
        %918 = vmatpush1.bf16.msra.mxu0 0
        %919 = vmatprep.subr.bf16.mxu0 0
        %920 = vmatpush1.bf16.msra.mxu0 0
        %921 = vmatprep.subr.bf16.mxu0 0
        %922 = vmatpush1.bf16.msra.mxu0 0
        %923 = vmatprep.subr.bf16.mxu0 0
        %924 = vmatpush1.bf16.msra.mxu0 0
        %925 = vmatprep.subr.bf16.mxu0 0
        %926 = vmatpush1.bf16.msra.mxu0 0
        %927 = vmatprep.subr.bf16.mxu0 0
        %928 = vmatpush1.bf16.msra.mxu0 0
        %929 = vmatprep.subr.bf16.mxu0 0
        %930 = vmatpush1.bf16.msra.mxu0 0
        %931 = vmatprep.subr.bf16.mxu0 0
        %932 = vmatpush1.bf16.msra.mxu0 %v915
        %933 = vmatprep.subr.bf16.mxu0 0
        %934 = vmatpush2.bf16.msra.mxu0 0
        %935 = vmatprep.subr.bf16.mxu0 0
        %936 = vmatpush2.bf16.msra.mxu0 0
        %937 = vmatprep.subr.bf16.mxu0 0
        %938 = vmatpush2.bf16.msra.mxu0 0
        %939 = vmatprep.subr.bf16.mxu0 0
        %940 = vmatpush2.bf16.msra.mxu0 0
        %941 = vmatprep.subr.bf16.mxu0 0
        %942 = vmatpush2.bf16.msra.mxu0 0
        %943 = vmatprep.subr.bf16.mxu0 0
        %944 = vmatpush2.bf16.msra.mxu0 0
        %945 = vmatprep.subr.bf16.mxu0 0
        %946 = vmatpush2.bf16.msra.mxu0 0
        %947 = vmatprep.subr.bf16.mxu0 0
        %948 = vmatpush2.bf16.msra.mxu0 0
        %949 = vmatprep.mubr.bf16.mxu0 0
        %950 = vmatmul.mubr.bf16.gmra.mxu0 %v911
        %v951 = vpop.f32.mrf.mxu0
        %v952 = vadd.f32 0.0, %v951
        %v953 = vpop.f32.mrf.mxu0
        %v954 = vpop.f32.mrf.mxu0
        %v955 = vpop.f32.mrf.mxu0
        %956 = vdwg.mxu0
        %957 = vrot.lane.b32.xlu0 %v820, 64
        %v958 = vpop.permute.xlu0 %957
        %v960 = vsel %vm869, %v907, 0
        %v963 = vsel %vm913, %v958, 0
        %965 = vmatprep.subr.bf16.mxu0 0
        %966 = vmatpush1.bf16.msra.mxu0 0
        %967 = vmatprep.subr.bf16.mxu0 0
        %968 = vmatpush1.bf16.msra.mxu0 0
        %969 = vmatprep.subr.bf16.mxu0 0
        %970 = vmatpush1.bf16.msra.mxu0 0
        %971 = vmatprep.subr.bf16.mxu0 0
        %972 = vmatpush1.bf16.msra.mxu0 0
        %973 = vmatprep.subr.bf16.mxu0 0
        %974 = vmatpush1.bf16.msra.mxu0 0
        %975 = vmatprep.subr.bf16.mxu0 0
        %976 = vmatpush1.bf16.msra.mxu0 0
        %977 = vmatprep.subr.bf16.mxu0 0
        %978 = vmatpush1.bf16.msra.mxu0 0
        %979 = vmatprep.subr.bf16.mxu0 0
        %980 = vmatpush1.bf16.msra.mxu0 %v963
        %981 = vmatprep.subr.bf16.mxu0 0
        %982 = vmatpush2.bf16.msra.mxu0 0
        %983 = vmatprep.subr.bf16.mxu0 0
        %984 = vmatpush2.bf16.msra.mxu0 0
        %985 = vmatprep.subr.bf16.mxu0 0
        %986 = vmatpush2.bf16.msra.mxu0 0
        %987 = vmatprep.subr.bf16.mxu0 0
        %988 = vmatpush2.bf16.msra.mxu0 0
        %989 = vmatprep.subr.bf16.mxu0 0
        %990 = vmatpush2.bf16.msra.mxu0 0
        %991 = vmatprep.subr.bf16.mxu0 0
        %992 = vmatpush2.bf16.msra.mxu0 0
        %993 = vmatprep.subr.bf16.mxu0 0
        %994 = vmatpush2.bf16.msra.mxu0 0
        %995 = vmatprep.subr.bf16.mxu0 0
        %996 = vmatpush2.bf16.msra.mxu0 0
        %997 = vmatprep.mubr.bf16.mxu0 0
        %998 = vmatmul.mubr.bf16.gmra.mxu0 %v960
        %v999 = vpop.f32.mrf.mxu0
        %v1000 = vadd.f32 0.0, %v999
        %v1001 = vpop.f32.mrf.mxu0
        %v1002 = vpop.f32.mrf.mxu0
        %v1003 = vpop.f32.mrf.mxu0
        %1004 = vdwg.mxu0
        %1005 = vst.msk [vmem:[#allocation3] sm:$0xff] %vm773, %v952
        %1006 = vst.msk [vmem:[#allocation3 + $0x8] sm:$0xff] %vm773, %v1000
        %1007 = vrot.lane.b32.xlu0 %v765, 112
        %v1008 = vpop.permute.xlu0 %1007
        %1009 = vrot.lane.b32.xlu0 %v770, 80
        %v1010 = vpop.permute.xlu0 %1009
        %v1012 = vsel %vm773, %v1008, 0
        %v1015 = vsel %vm773, %v1010, 0
        %1017 = vmatprep.subr.bf16.mxu0 0
        %1018 = vmatpush1.bf16.xpose.msra.mxu0 0
        %1019 = vmatprep.subr.bf16.mxu0 0
        %1020 = vmatpush1.bf16.xpose.msra.mxu0 0
        %1021 = vmatprep.subr.bf16.mxu0 0
        %1022 = vmatpush1.bf16.xpose.msra.mxu0 0
        %1023 = vmatprep.subr.bf16.mxu0 0
        %1024 = vmatpush1.bf16.xpose.msra.mxu0 0
        %1025 = vmatprep.subr.bf16.mxu0 0
        %1026 = vmatpush1.bf16.xpose.msra.mxu0 0
        %1027 = vmatprep.subr.bf16.mxu0 0
        %1028 = vmatpush1.bf16.xpose.msra.mxu0 0
        %1029 = vmatprep.subr.bf16.mxu0 0
        %1030 = vmatpush1.bf16.xpose.msra.mxu0 0
        %1031 = vmatprep.subr.bf16.mxu0 0
        %1032 = vmatpush1.bf16.xpose.msra.mxu0 %v1015
        %1033 = vmatprep.subr.bf16.mxu0 0
        %1034 = vmatpush2.bf16.xpose.msra.mxu0 0
        %1035 = vmatprep.subr.bf16.mxu0 0
        %1036 = vmatpush2.bf16.xpose.msra.mxu0 0
        %1037 = vmatprep.subr.bf16.mxu0 0
        %1038 = vmatpush2.bf16.xpose.msra.mxu0 0
        %1039 = vmatprep.subr.bf16.mxu0 0
        %1040 = vmatpush2.bf16.xpose.msra.mxu0 0
        %1041 = vmatprep.subr.bf16.mxu0 0
        %1042 = vmatpush2.bf16.xpose.msra.mxu0 0
        %1043 = vmatprep.subr.bf16.mxu0 0
        %1044 = vmatpush2.bf16.xpose.msra.mxu0 0
        %1045 = vmatprep.subr.bf16.mxu0 0
        %1046 = vmatpush2.bf16.xpose.msra.mxu0 0
        %1047 = vmatprep.subr.bf16.mxu0 0
        %1048 = vmatpush2.bf16.xpose.msra.mxu0 0
        %1049 = vmatprep.mubr.bf16.mxu0 0
        %1050 = vmatmul.mubr.bf16.gmra.mxu0 %v1012
        %v1051 = vpop.f32.mrf.mxu0
        %v1052 = vadd.f32 %v687, %v1051
        %v1053 = vpop.f32.mrf.mxu0
        %v1054 = vpop.f32.mrf.mxu0
        %v1055 = vpop.f32.mrf.mxu0
        %1056 = vdwg.mxu0
        %1057 = vrot.lane.b32.xlu0 %v766, 112
        %v1058 = vpop.permute.xlu0 %1057
        %1059 = vrot.lane.b32.xlu0 %v820, 80
        %v1060 = vpop.permute.xlu0 %1059
        %v1062 = vsel %vm773, %v1058, 0
        %v1065 = vsel %vm773, %v1060, 0
        %1067 = vmatprep.subr.bf16.mxu0 0
        %1068 = vmatpush1.bf16.xpose.msra.mxu0 0
        %1069 = vmatprep.subr.bf16.mxu0 0
        %1070 = vmatpush1.bf16.xpose.msra.mxu0 0
        %1071 = vmatprep.subr.bf16.mxu0 0
        %1072 = vmatpush1.bf16.xpose.msra.mxu0 0
        %1073 = vmatprep.subr.bf16.mxu0 0
        %1074 = vmatpush1.bf16.xpose.msra.mxu0 0
        %1075 = vmatprep.subr.bf16.mxu0 0
        %1076 = vmatpush1.bf16.xpose.msra.mxu0 0
        %1077 = vmatprep.subr.bf16.mxu0 0
        %1078 = vmatpush1.bf16.xpose.msra.mxu0 0
        %1079 = vmatprep.subr.bf16.mxu0 0
        %1080 = vmatpush1.bf16.xpose.msra.mxu0 0
        %1081 = vmatprep.subr.bf16.mxu0 0
        %1082 = vmatpush1.bf16.xpose.msra.mxu0 %v1065
        %1083 = vmatprep.subr.bf16.mxu0 0
        %1084 = vmatpush2.bf16.xpose.msra.mxu0 0
        %1085 = vmatprep.subr.bf16.mxu0 0
        %1086 = vmatpush2.bf16.xpose.msra.mxu0 0
        %1087 = vmatprep.subr.bf16.mxu0 0
        %1088 = vmatpush2.bf16.xpose.msra.mxu0 0
        %1089 = vmatprep.subr.bf16.mxu0 0
        %1090 = vmatpush2.bf16.xpose.msra.mxu0 0
        %1091 = vmatprep.subr.bf16.mxu0 0
        %1092 = vmatpush2.bf16.xpose.msra.mxu0 0
        %1093 = vmatprep.subr.bf16.mxu0 0
        %1094 = vmatpush2.bf16.xpose.msra.mxu0 0
        %1095 = vmatprep.subr.bf16.mxu0 0
        %1096 = vmatpush2.bf16.xpose.msra.mxu0 0
        %1097 = vmatprep.subr.bf16.mxu0 0
        %1098 = vmatpush2.bf16.xpose.msra.mxu0 0
        %1099 = vmatprep.mubr.bf16.mxu0 0
        %1100 = vmatmul.mubr.bf16.gmra.mxu0 %v1062
        %v1101 = vpop.f32.mrf.mxu0
        %v1102 = vadd.f32 %v688, %v1101
        %v1103 = vpop.f32.mrf.mxu0
        %v1104 = vpop.f32.mrf.mxu0
        %v1105 = vpop.f32.mrf.mxu0
        %1106 = vdwg.mxu0
        %v1107 = vsel %vm869, %v1052, -inf
        %1108 = vmax.xlane.f32.xlu0 %v1107
        %v1109 = vpop.xlane.xlu0 %1108
        %v1110 = vsel %vm869, %v1102, -inf
        %1111 = vmax.xlane.f32.xlu0 %v1110
        %v1112 = vpop.xlane.xlu0 %1111
        %v1113 = vsub.f32 %v1052, %v1109
        %v1114 = vsub.f32 %v1102, %v1112
        %v1115 = vmul.f32 %v1113, 1.442695
        %v1116 = vpow.pop %v1115
        %v1117 = vmul.f32 %v1114, 1.442695
        %v1118 = vpow.pop %v1117
        %v1119 = vsel %vm869, %v1116, 0.0
        %1120 = vadd.xlane.f32.xlu0 %v1119
        %v1121 = vpop.xlane.xlu0 %1120
        %v1122 = vsel %vm869, %v1118, 0.0
        %1123 = vadd.xlane.f32.xlu0 %v1122
        %v1124 = vpop.xlane.xlu0 %1123
        %v1125 = vrcp.pop %v1121
        %v1126 = vrcp.pop %v1124
        %v1127 = vmul.f32 %v1116, %v1125
        %v1128 = vmul.f32 %v1118, %v1126
        %v1129 = vmul.f32 %v1127, %v895
        %v1130 = vmul.f32 %v1128, %v900
        %s1131 = scalar_lea.vmem %s668, 16
        %1132 = vst.msk [vmem:[%s1131] sm:$0xff] %vm869, %v1129
        %1133 = vst.msk [vmem:[%s1131 + $0x8] sm:$0xff] %vm869, %v1130
        %v1134 = vpack.c.bf16 %v1129, %v1129
        %v1135 = vpack.c.bf16 %v1130, %v1130
        %1136 = vrot.lane.b32.xlu0 %v770, 48
        %v1137 = vpop.permute.xlu0 %1136
        %v1139 = vsel %vm869, %v1134, 0
        %v1142 = vsel %vm913, %v1137, 0
        %1144 = vmatprep.subr.bf16.mxu0 0
        %1145 = vmatpush1.bf16.msra.mxu0 0
        %1146 = vmatprep.subr.bf16.mxu0 0
        %1147 = vmatpush1.bf16.msra.mxu0 0
        %1148 = vmatprep.subr.bf16.mxu0 0
        %1149 = vmatpush1.bf16.msra.mxu0 0
        %1150 = vmatprep.subr.bf16.mxu0 0
        %1151 = vmatpush1.bf16.msra.mxu0 0
        %1152 = vmatprep.subr.bf16.mxu0 0
        %1153 = vmatpush1.bf16.msra.mxu0 0
        %1154 = vmatprep.subr.bf16.mxu0 0
        %1155 = vmatpush1.bf16.msra.mxu0 0
        %1156 = vmatprep.subr.bf16.mxu0 0
        %1157 = vmatpush1.bf16.msra.mxu0 0
        %1158 = vmatprep.subr.bf16.mxu0 0
        %1159 = vmatpush1.bf16.msra.mxu0 %v1142
        %1160 = vmatprep.subr.bf16.mxu0 0
        %1161 = vmatpush2.bf16.msra.mxu0 0
        %1162 = vmatprep.subr.bf16.mxu0 0
        %1163 = vmatpush2.bf16.msra.mxu0 0
        %1164 = vmatprep.subr.bf16.mxu0 0
        %1165 = vmatpush2.bf16.msra.mxu0 0
        %1166 = vmatprep.subr.bf16.mxu0 0
        %1167 = vmatpush2.bf16.msra.mxu0 0
        %1168 = vmatprep.subr.bf16.mxu0 0
        %1169 = vmatpush2.bf16.msra.mxu0 0
        %1170 = vmatprep.subr.bf16.mxu0 0
        %1171 = vmatpush2.bf16.msra.mxu0 0
        %1172 = vmatprep.subr.bf16.mxu0 0
        %1173 = vmatpush2.bf16.msra.mxu0 0
        %1174 = vmatprep.subr.bf16.mxu0 0
        %1175 = vmatpush2.bf16.msra.mxu0 0
        %1176 = vmatprep.mubr.bf16.mxu0 0
        %1177 = vmatmul.mubr.bf16.gmra.mxu0 %v1139
        %v1178 = vpop.f32.mrf.mxu0
        %v1179 = vadd.f32 0.0, %v1178
        %v1180 = vpop.f32.mrf.mxu0
        %v1181 = vpop.f32.mrf.mxu0
        %v1182 = vpop.f32.mrf.mxu0
        %1183 = vdwg.mxu0
        %1184 = vrot.lane.b32.xlu0 %v820, 48
        %v1185 = vpop.permute.xlu0 %1184
        %v1187 = vsel %vm869, %v1135, 0
        %v1190 = vsel %vm913, %v1185, 0
        %1192 = vmatprep.subr.bf16.mxu0 0
        %1193 = vmatpush1.bf16.msra.mxu0 0
        %1194 = vmatprep.subr.bf16.mxu0 0
        %1195 = vmatpush1.bf16.msra.mxu0 0
        %1196 = vmatprep.subr.bf16.mxu0 0
        %1197 = vmatpush1.bf16.msra.mxu0 0
        %1198 = vmatprep.subr.bf16.mxu0 0
        %1199 = vmatpush1.bf16.msra.mxu0 0
        %1200 = vmatprep.subr.bf16.mxu0 0
        %1201 = vmatpush1.bf16.msra.mxu0 0
        %1202 = vmatprep.subr.bf16.mxu0 0
        %1203 = vmatpush1.bf16.msra.mxu0 0
        %1204 = vmatprep.subr.bf16.mxu0 0
        %1205 = vmatpush1.bf16.msra.mxu0 0
        %1206 = vmatprep.subr.bf16.mxu0 0
        %1207 = vmatpush1.bf16.msra.mxu0 %v1190
        %1208 = vmatprep.subr.bf16.mxu0 0
        %1209 = vmatpush2.bf16.msra.mxu0 0
        %1210 = vmatprep.subr.bf16.mxu0 0
        %1211 = vmatpush2.bf16.msra.mxu0 0
        %1212 = vmatprep.subr.bf16.mxu0 0
        %1213 = vmatpush2.bf16.msra.mxu0 0
        %1214 = vmatprep.subr.bf16.mxu0 0
        %1215 = vmatpush2.bf16.msra.mxu0 0
        %1216 = vmatprep.subr.bf16.mxu0 0
        %1217 = vmatpush2.bf16.msra.mxu0 0
        %1218 = vmatprep.subr.bf16.mxu0 0
        %1219 = vmatpush2.bf16.msra.mxu0 0
        %1220 = vmatprep.subr.bf16.mxu0 0
        %1221 = vmatpush2.bf16.msra.mxu0 0
        %1222 = vmatprep.subr.bf16.mxu0 0
        %1223 = vmatpush2.bf16.msra.mxu0 0
        %1224 = vmatprep.mubr.bf16.mxu0 0
        %1225 = vmatmul.mubr.bf16.gmra.mxu0 %v1187
        %v1226 = vpop.f32.mrf.mxu0
        %v1227 = vadd.f32 0.0, %v1226
        %v1228 = vpop.f32.mrf.mxu0
        %v1229 = vpop.f32.mrf.mxu0
        %v1230 = vpop.f32.mrf.mxu0
        %1231 = vdwg.mxu0
        %1234 = vrot.lane.b32.xlu0 %v1179, 16
        %v1235 = vpop.permute.xlu0 %1234
        %1236 = vrot.lane.b32.xlu0 %v1227, 16
        %v1237 = vpop.permute.xlu0 %1236
        %vm1240 = vcmask 261248
        %1241 = vst.msk [vmem:[#allocation3] sm:$0xff] %vm1240, %v1235
        %1242 = vst.msk [vmem:[#allocation3 + $0x8] sm:$0xff] %vm1240, %v1237
        %v1243 = vld [vmem:[#allocation3] sm:$0xff]
        %v1244 = vld [vmem:[#allocation3 + $0x8] sm:$0xff]
        %v1245 = vpack.c.bf16 %v1244, %v1243
        %v1246 = vld [vmem:[%s634] sm:$0xf]
        %v1247 = vld [vmem:[%s634 + $0x4] sm:$0xf]
        %v1248 = vld [vmem:[%s634 + $0x8] sm:$0xf]
        %v1249 = vld [vmem:[%s634 + $0xc] sm:$0xf]
        %v1250 = vld [vmem:[%s637] sm:$0x1]
        %v1252 = vlaneseq
        %v1253 = vshrl.u32 %v1252, 7
        %v1254 = vsub.s32 0, %v1253
        %v1255 = vrot.slane %v1250, %v1254
        %v1261 = vunpack.c.l.b16 %v1246
        %v1262 = vunpack.c.l.b16 %v1247
        %v1263 = vunpack.c.l.b16 %v1248
        %v1264 = vunpack.c.l.b16 %v1249
        %v1265 = vpack.c.b16 %v1262, %v1261
        %v1266 = vpack.c.b16 %v1264, %v1263
        %v1270 = vsel %vm713, %v1245, 0
        %1272 = vmatprep.subr.bf16.mxu0 0
        %1273 = vmatpush1.bf16.msra.mxu0 0
        %1274 = vmatprep.subr.bf16.mxu0 0
        %1275 = vmatpush1.bf16.msra.mxu0 0
        %1276 = vmatprep.subr.bf16.mxu0 0
        %1277 = vmatpush1.bf16.msra.mxu0 0
        %1278 = vmatprep.subr.bf16.mxu0 0
        %1279 = vmatpush1.bf16.msra.mxu0 0
        %1280 = vmatprep.subr.bf16.mxu0 0
        %1281 = vmatpush1.bf16.msra.mxu0 0
        %1282 = vmatprep.subr.bf16.mxu0 0
        %1283 = vmatpush1.bf16.msra.mxu0 0
        %1284 = vmatprep.subr.bf16.mxu0 0
        %1285 = vmatpush1.bf16.msra.mxu0 %v1266
        %1286 = vmatprep.subr.bf16.mxu0 0
        %1287 = vmatpush1.bf16.msra.mxu0 %v1265
        %1288 = vmatprep.subr.bf16.mxu0 0
        %1289 = vmatpush2.bf16.msra.mxu0 0
        %1290 = vmatprep.subr.bf16.mxu0 0
        %1291 = vmatpush2.bf16.msra.mxu0 0
        %1292 = vmatprep.subr.bf16.mxu0 0
        %1293 = vmatpush2.bf16.msra.mxu0 0
        %1294 = vmatprep.subr.bf16.mxu0 0
        %1295 = vmatpush2.bf16.msra.mxu0 0
        %1296 = vmatprep.subr.bf16.mxu0 0
        %1297 = vmatpush2.bf16.msra.mxu0 0
        %1298 = vmatprep.subr.bf16.mxu0 0
        %1299 = vmatpush2.bf16.msra.mxu0 0
        %1300 = vmatprep.subr.bf16.mxu0 0
        %1301 = vmatpush2.bf16.msra.mxu0 0
        %1302 = vmatprep.subr.bf16.mxu0 0
        %1303 = vmatpush2.bf16.msra.mxu0 0
        %1304 = vmatprep.mubr.bf16.mxu0 0
        %1305 = vmatmul.mubr.bf16.gmra.mxu0 %v1270
        %v1306 = vpop.f32.mrf.mxu0
        %v1307 = vadd.f32 %v1255, %v1306
        %v1308 = vpop.f32.mrf.mxu0
        %v1309 = vpop.f32.mrf.mxu0
        %v1310 = vadd.f32 %v1255, %v1309
        %v1311 = vpop.f32.mrf.mxu0
        %1312 = vdwg.mxu0
        %v1313 = vld [vmem:[%s641] sm:$0xf]
        %v1314 = vadd.f32 %v1307, %v681
        %v1315 = vadd.f32 %v1310, %v682
        %v1316 = vsel %vm713, %v1314, 0.0
        %1317 = vadd.xlane.f32.xlu0 %v1316
        %v1318 = vpop.xlane.xlu0 %1317
        %v1319 = vsel %vm713, %v1315, 0.0
        %1320 = vadd.xlane.f32.xlu0 %v1319
        %v1321 = vpop.xlane.xlu0 %1320
        %v1322 = vrcp.pop 32.0
        %v1323 = vmul.f32 %v1318, %v1322
        %v1324 = vmul.f32 %v1321, %v1322
        %v1325 = vsub.f32 %v1314, %v1323
        %v1326 = vsub.f32 %v1315, %v1324
        %v1327 = vmul.f32 %v1325, %v1325
        %v1328 = vmul.f32 %v1326, %v1326
        %v1329 = vsel %vm713, %v1327, 0.0
        %1330 = vadd.xlane.f32.xlu0 %v1329
        %v1331 = vpop.xlane.xlu0 %1330
        %v1332 = vsel %vm713, %v1328, 0.0
        %1333 = vadd.xlane.f32.xlu0 %v1332
        %v1334 = vpop.xlane.xlu0 %1333
        %v1335 = vmul.f32 %v1331, %v1322
        %v1336 = vmul.f32 %v1334, %v1322
        %v1337 = vadd.f32 %v1335, 1e-05
        %v1338 = vadd.f32 %v1336, 1e-05
        %v1339 = vrsqrt.pop %v1337
        %v1340 = vrsqrt.pop %v1338
        %v1341 = vmul.f32 %v1325, %v1339
        %v1342 = vmul.f32 %v1326, %v1340
        %v1343 = vlaneseq
        %v1344 = vshrl.u32 %v1343, 7
        %v1345 = vsub.s32 0, %v1344
        %v1346 = vrot.slane %v1313, %v1345
        %v1347 = vmul.f32 %v1341, %v1346
        %v1348 = vmul.f32 %v1342, %v1346
        %v1349 = vlaneseq
        %v1350 = vshrl.u32 %v1349, 7
        %v1351 = vsub.s32 1, %v1350
        %v1352 = vrot.slane %v1313, %v1351
        %v1353 = vadd.f32 %v1347, %v1352
        %v1354 = vadd.f32 %v1348, %v1352
        %v1355 = vmul.f32 %v1353, %v895
        %v1356 = vmul.f32 %v1354, %v900
        %v1357 = vpack.c.bf16 %v1356, %v1355
        %v1358 = vld [vmem:[%s646] sm:$0xf]
        %v1359 = vld [vmem:[%s646 + $0x4] sm:$0xf]
        %v1360 = vld [vmem:[%s646 + $0x8] sm:$0xf]
        %v1361 = vld [vmem:[%s646 + $0xc] sm:$0xf]
        %v1362 = vld [vmem:[%s649] sm:$0x1]
        %v1364 = vlaneseq
        %v1365 = vshrl.u32 %v1364, 7
        %v1366 = vsub.s32 0, %v1365
        %v1367 = vrot.slane %v1362, %v1366
        %v1373 = vunpack.c.l.b16 %v1358
        %v1374 = vunpack.c.l.b16 %v1359
        %v1375 = vunpack.c.l.b16 %v1360
        %v1376 = vunpack.c.l.b16 %v1361
        %v1377 = vpack.c.b16 %v1374, %v1373
        %v1378 = vpack.c.b16 %v1376, %v1375
        %v1382 = vsel %vm713, %v1357, 0
        %1384 = vmatprep.subr.bf16.mxu0 0
        %1385 = vmatpush1.bf16.msra.mxu0 0
        %1386 = vmatprep.subr.bf16.mxu0 0
        %1387 = vmatpush1.bf16.msra.mxu0 0
        %1388 = vmatprep.subr.bf16.mxu0 0
        %1389 = vmatpush1.bf16.msra.mxu0 0
        %1390 = vmatprep.subr.bf16.mxu0 0
        %1391 = vmatpush1.bf16.msra.mxu0 0
        %1392 = vmatprep.subr.bf16.mxu0 0
        %1393 = vmatpush1.bf16.msra.mxu0 0
        %1394 = vmatprep.subr.bf16.mxu0 0
        %1395 = vmatpush1.bf16.msra.mxu0 0
        %1396 = vmatprep.subr.bf16.mxu0 0
        %1397 = vmatpush1.bf16.msra.mxu0 %v1378
        %1398 = vmatprep.subr.bf16.mxu0 0
        %1399 = vmatpush1.bf16.msra.mxu0 %v1377
        %1400 = vmatprep.subr.bf16.mxu0 0
        %1401 = vmatpush2.bf16.msra.mxu0 0
        %1402 = vmatprep.subr.bf16.mxu0 0
        %1403 = vmatpush2.bf16.msra.mxu0 0
        %1404 = vmatprep.subr.bf16.mxu0 0
        %1405 = vmatpush2.bf16.msra.mxu0 0
        %1406 = vmatprep.subr.bf16.mxu0 0
        %1407 = vmatpush2.bf16.msra.mxu0 0
        %1408 = vmatprep.subr.bf16.mxu0 0
        %1409 = vmatpush2.bf16.msra.mxu0 0
        %1410 = vmatprep.subr.bf16.mxu0 0
        %1411 = vmatpush2.bf16.msra.mxu0 0
        %1412 = vmatprep.subr.bf16.mxu0 0
        %1413 = vmatpush2.bf16.msra.mxu0 0
        %1414 = vmatprep.subr.bf16.mxu0 0
        %1415 = vmatpush2.bf16.msra.mxu0 0
        %1416 = vmatprep.mubr.bf16.mxu0 0
        %1417 = vmatmul.mubr.bf16.gmra.mxu0 %v1382
        %v1418 = vpop.f32.mrf.mxu0
        %v1419 = vadd.f32 %v1367, %v1418
        %v1420 = vpop.f32.mrf.mxu0
        %v1421 = vpop.f32.mrf.mxu0
        %v1422 = vadd.f32 %v1367, %v1421
        %v1423 = vpop.f32.mrf.mxu0
        %1424 = vdwg.mxu0
        %v1425 = vmax.f32 %v1419, 0.0
        %v1426 = vmax.f32 %v1422, 0.0
        %v1427 = vpack.c.bf16 %v1426, %v1425
        %v1428 = vld [vmem:[%s654] sm:$0xf]
        %v1429 = vld [vmem:[%s654 + $0x4] sm:$0xf]
        %v1430 = vld [vmem:[%s654 + $0x8] sm:$0xf]
        %v1431 = vld [vmem:[%s654 + $0xc] sm:$0xf]
        %v1432 = vld [vmem:[%s654 + $0x10] sm:$0xf]
        %v1433 = vld [vmem:[%s654 + $0x14] sm:$0xf]
        %v1434 = vld [vmem:[%s654 + $0x18] sm:$0xf]
        %v1435 = vld [vmem:[%s654 + $0x1c] sm:$0xf]
        %v1436 = vld [vmem:[%s657] sm:$0x1]
        %v1438 = vlaneseq
        %v1439 = vshrl.u32 %v1438, 7
        %v1440 = vsub.s32 0, %v1439
        %v1441 = vrot.slane %v1436, %v1440
        %v1451 = vunpack.c.l.b16 %v1428
        %v1452 = vunpack.c.l.b16 %v1429
        %v1453 = vunpack.c.l.b16 %v1430
        %v1454 = vunpack.c.l.b16 %v1431
        %v1455 = vunpack.c.l.b16 %v1432
        %v1456 = vunpack.c.l.b16 %v1433
        %v1457 = vunpack.c.l.b16 %v1434
        %v1458 = vunpack.c.l.b16 %v1435
        %v1459 = vpack.c.b16 %v1452, %v1451
        %v1460 = vpack.c.b16 %v1454, %v1453
        %v1461 = vpack.c.b16 %v1456, %v1455
        %v1462 = vpack.c.b16 %v1458, %v1457
        %vm1467 = vcmask 523264
        %v1469 = vsel %vm1467, %v1427, 0
        %1471 = vmatprep.subr.bf16.mxu0 0
        %1472 = vmatpush1.bf16.msra.mxu0 0
        %1473 = vmatprep.subr.bf16.mxu0 0
        %1474 = vmatpush1.bf16.msra.mxu0 0
        %1475 = vmatprep.subr.bf16.mxu0 0
        %1476 = vmatpush1.bf16.msra.mxu0 0
        %1477 = vmatprep.subr.bf16.mxu0 0
        %1478 = vmatpush1.bf16.msra.mxu0 0
        %1479 = vmatprep.subr.bf16.mxu0 0
        %1480 = vmatpush1.bf16.msra.mxu0 %v1462
        %1481 = vmatprep.subr.bf16.mxu0 0
        %1482 = vmatpush1.bf16.msra.mxu0 %v1461
        %1483 = vmatprep.subr.bf16.mxu0 0
        %1484 = vmatpush1.bf16.msra.mxu0 %v1460
        %1485 = vmatprep.subr.bf16.mxu0 0
        %1486 = vmatpush1.bf16.msra.mxu0 %v1459
        %1487 = vmatprep.subr.bf16.mxu0 0
        %1488 = vmatpush2.bf16.msra.mxu0 0
        %1489 = vmatprep.subr.bf16.mxu0 0
        %1490 = vmatpush2.bf16.msra.mxu0 0
        %1491 = vmatprep.subr.bf16.mxu0 0
        %1492 = vmatpush2.bf16.msra.mxu0 0
        %1493 = vmatprep.subr.bf16.mxu0 0
        %1494 = vmatpush2.bf16.msra.mxu0 0
        %1495 = vmatprep.subr.bf16.mxu0 0
        %1496 = vmatpush2.bf16.msra.mxu0 0
        %1497 = vmatprep.subr.bf16.mxu0 0
        %1498 = vmatpush2.bf16.msra.mxu0 0
        %1499 = vmatprep.subr.bf16.mxu0 0
        %1500 = vmatpush2.bf16.msra.mxu0 0
        %1501 = vmatprep.subr.bf16.mxu0 0
        %1502 = vmatpush2.bf16.msra.mxu0 0
        %1503 = vmatprep.mubr.bf16.mxu0 0
        %1504 = vmatmul.mubr.bf16.gmra.mxu0 %v1469
        %v1505 = vpop.f32.mrf.mxu0
        %v1506 = vadd.f32 %v1441, %v1505
        %v1507 = vpop.f32.mrf.mxu0
        %v1508 = vpop.f32.mrf.mxu0
        %v1509 = vadd.f32 %v1441, %v1508
        %v1510 = vpop.f32.mrf.mxu0
        %1511 = vdwg.mxu0
        %v1512 = vadd.f32 %v1506, %v1355
        %v1513 = vadd.f32 %v1509, %v1356
        %v1514 = vsel %vm713, %v1512, 0.0
        %1515 = vadd.xlane.f32.xlu0 %v1514
        %v1516 = vpop.xlane.xlu0 %1515
        %v1517 = vsel %vm713, %v1513, 0.0
        %1518 = vadd.xlane.f32.xlu0 %v1517
        %v1519 = vpop.xlane.xlu0 %1518
        %v1520 = vmul.f32 %v1516, %v1322
        %v1521 = vmul.f32 %v1519, %v1322
        %v1522 = vsub.f32 %v1512, %v1520
        %v1523 = vsub.f32 %v1513, %v1521
        %v1524 = vmul.f32 %v1522, %v1522
        %v1525 = vmul.f32 %v1523, %v1523
        %v1526 = vsel %vm713, %v1524, 0.0
        %1527 = vadd.xlane.f32.xlu0 %v1526
        %v1528 = vpop.xlane.xlu0 %1527
        %v1529 = vsel %vm713, %v1525, 0.0
        %1530 = vadd.xlane.f32.xlu0 %v1529
        %v1531 = vpop.xlane.xlu0 %1530
        %v1532 = vmul.f32 %v1528, %v1322
        %v1533 = vmul.f32 %v1531, %v1322
        %v1534 = vadd.f32 %v1532, 1e-05
        %v1535 = vadd.f32 %v1533, 1e-05
        %v1536 = vrsqrt.pop %v1534
        %v1537 = vrsqrt.pop %v1535
        %v1538 = vmul.f32 %v1522, %v1536
        %v1539 = vmul.f32 %v1523, %v1537
        %v1540 = vlaneseq
        %v1541 = vshrl.u32 %v1540, 7
        %v1542 = vsub.s32 2, %v1541
        %v1543 = vrot.slane %v1313, %v1542
        %v1544 = vmul.f32 %v1538, %v1543
        %v1545 = vmul.f32 %v1539, %v1543
        %v1546 = vlaneseq
        %v1547 = vshrl.u32 %v1546, 7
        %v1548 = vsub.s32 3, %v1547
        %v1549 = vrot.slane %v1313, %v1548
        %v1550 = vadd.f32 %v1544, %v1549
        %v1551 = vadd.f32 %v1545, %v1549
        %v1552 = vmul.f32 %v1550, %v895
        %v1553 = vmul.f32 %v1551, %v900
        %1554 = vst.msk [vmem:[#allocation2] sm:$0xff] %vm713, %v1552
        %1555 = vst.msk [vmem:[#allocation2 + $0x8] sm:$0xff] %vm713, %v1553
        %1556 = vst.msk [vmem:[#allocation4] sm:$0xff] %vm713, %v1552
        %1557 = vst.msk [vmem:[#allocation4 + $0x8] sm:$0xff] %vm713, %v1553
        %s1558 = smul.u32 2, %s31
        %s1559 = smul.u32 2, %s30
        %p1560 = scmp.lt.s32.totalorder %s1558, 3
        %s1561 = scalar_select %p1560, %s1558, 3
        %p1562 = scmp.lt.s32.totalorder %s1559, 1
        %s1563 = scalar_select %p1562, %s1559, 1
        %s1564 = smul.addr %s1561, 2
        %s1565 = sadd.s32 %s1563, %s1564
        %s1566 = smul.addr %s1565, 8
        %s1567 = scalar_lea.vmem %s13, %s1566
        // Predicated region
        $region73: #{syn_trf_encoder_forward.1} parent=67 // pred_check
          %p1568 = pneg %p368
        $region74: #{syn_trf_encoder_forward.1} parent=67 // pred_check_branch
          %1570 = sbr.rel (%p1568) target = $region76
        $region75: #{syn_trf_encoder_forward.1} parent=67 // pred_region
          %s1571 = smul.u32 2, %s30
          %s1573 = ssub.s32 256, 256
          %1574 = vsyncadd [#allocation5], %s1573
          %s1575 = smul.addr %s1571, 128
          %s1576 = scalar_lea.hbm %s12, %s1575
          %s1577 = sshll.u32 [#allocation4], 4
          %s1578 = int_to_ptr.vmem [resolvable:$true] %s1577
          %1583 = dma.vmem_to_hbm [thread:$0]  %s1578, 256, %s1576, [#allocation5], 128, 128, 8
        $region76: #{syn_trf_encoder_forward.1} parent=67 // pred_fallthru
          _
        // Predicated region
        $region77: #{syn_trf_encoder_forward.1} parent=67 // pred_check
          %p1584 = pneg %p396
        $region78: #{syn_trf_encoder_forward.1} parent=67 // pred_check_branch
          %1586 = sbr.rel (%p1584) target = $region80
        $region79: #{syn_trf_encoder_forward.1} parent=67 // pred_region
          %s1587 = smul.u32 2, %s31
          %s1588 = smul.u32 2, %s30
        $region80: #{syn_trf_encoder_forward.1} parent=67 // pred_fallthru
          _
        // Predicated region
        $region81: #{syn_trf_encoder_forward.1} parent=67 // pred_check
          %p1589 = pneg %p368
        $region82: #{syn_trf_encoder_forward.1} parent=67 // pred_check_branch
          %1591 = sbr.rel (%p1589) target = $region84
        $region83: #{syn_trf_encoder_forward.1} parent=67 // pred_region
          %1592 = dma.done [#allocation5], 256
        $region84: #{syn_trf_encoder_forward.1} parent=67 // pred_fallthru
          _
      $region68: #{syn_trf_encoder_forward.1} parent=5 // pred_fallthru
        _
      %p1593 = scmp.le.s32.totalorder 2, %s21
      // Predicated region
      $region85: #{syn_trf_encoder_forward.1} parent=5 // pred_check
        %p1594 = pneg %p1593
      $region86: #{syn_trf_encoder_forward.1} parent=5 // pred_check_branch
        %1596 = sbr.rel (%p1594) target = $region88
      $region87: #{syn_trf_encoder_forward.1} parent=5 // pred_region
        %s1597 = ssub.s32 %s21, 2
        // Predicated region
        $region89: #{syn_trf_encoder_forward.1} parent=87 // pred_check
          %p1598 = pneg %p402
        $region90: #{syn_trf_encoder_forward.1} parent=87 // pred_check_branch
          %1600 = sbr.rel (%p1598) target = $region92
        $region91: #{syn_trf_encoder_forward.1} parent=87 // pred_region
          %s1601 = smul.u32 2, %s33
          %s1602 = smul.u32 2, %s32
          %p1603 = scmp.lt.s32.totalorder %s1601, 3
          %s1604 = scalar_select %p1603, %s1601, 3
          %p1605 = scmp.lt.s32.totalorder %s1602, 1
          %s1606 = scalar_select %p1605, %s1602, 1
          %s1607 = smul.addr %s1604, 2
          %s1608 = sadd.s32 %s1606, %s1607
          %s1609 = smul.addr %s1608, 8
          %s1610 = scalar_lea.vmem %s13, %s1609
        $region92: #{syn_trf_encoder_forward.1} parent=87 // pred_fallthru
          _
      $region88: #{syn_trf_encoder_forward.1} parent=5 // pred_fallthru
        _
    $region6: #{syn_trf_encoder_forward.1} parent=1 // loop_footer
      %s25 = sadd.s32 1, %s21
    $region7: #{syn_trf_encoder_forward.1} parent=1 // loop_footer_branch
      %20 = sbr.rel target = $region3
    $region8: #{syn_trf_encoder_forward.1} parent=1 // loop_exit
      _
    %1611 = vsyncpa [#allocation5], 1
    %s1612 = scalar_lea.sflag [#allocation5], 1
    %1613 = vsyncpa %s1612, 1

</llo_original>
